<compile_context>
chip_gen: v6e
topology: v6e:2x2x1
jax: 0.10.0
libtpu: 0.0.40
codegen_flags: <defaults>
</compile_context>

<pallas_src>
import jax
import jax.numpy as jnp
from jax.experimental import pallas as pl
from jax.experimental.pallas import tpu as pltpu

_LN_EPS = 1e-5
_INV_SQRT2 = 0.7071067811865476


def _erf_poly(x):
    # Abramowitz & Stegun 7.1.26 polynomial approximation of erf, |err|<=1.5e-7.
    p = 0.3275911
    a1, a2, a3, a4, a5 = (0.254829592, -0.284496736, 1.421413741,
                          -1.453152027, 1.061405429)
    ax = jnp.abs(x)
    t = 1.0 / (1.0 + p * ax)
    poly = ((((a5 * t + a4) * t + a3) * t + a2) * t + a1) * t
    y = 1.0 - poly * jnp.exp(-ax * ax)
    return jnp.where(x >= 0.0, y, -y)


def _gelu_exact(x):
    # Matches PyTorch nn.GELU() (erf formulation) to ~1e-7.
    return 0.5 * x * (1.0 + _erf_poly(x * _INV_SQRT2))


def _load_layer_kernel(x_ref, w1_ref, b1_ref, w2_ref, b2_ref, o_ref):
    # x_ref  : (TM, D)  row tile of flattened tokens (lane dim = D, lane-dense)
    # w1_ref : (D, H)   gamma-folded fc1 weight (in, out)   b1_ref : (1, H)
    # w2_ref : (H, D)   fc2 weight (in, out)                b2_ref : (1, D)
    # o_ref  : (TM, D)
    x = x_ref[...].astype(jnp.float32)

    # LayerNorm statistics over the feature dim (affine folded into w1/b1).
    mu = jnp.mean(x, axis=-1, keepdims=True)
    xc = x - mu
    var = jnp.mean(xc * xc, axis=-1, keepdims=True)
    xn = xc * jax.lax.rsqrt(var + _LN_EPS)

    # Mlp: Linear -> GELU -> Linear (dropout is identity at inference).
    h = jnp.dot(xn, w1_ref[...].astype(jnp.float32),
                preferred_element_type=jnp.float32)
    h = h + b1_ref[...].astype(jnp.float32)
    h = _gelu_exact(h)
    y = jnp.dot(h, w2_ref[...].astype(jnp.float32),
                preferred_element_type=jnp.float32)
    y = y + b2_ref[...].astype(jnp.float32)

    o_ref[...] = y.astype(o_ref.dtype)


def load_layer(tokens, ln_gamma, ln_beta, w1, b1, w2, b2, pos_emb, *,
               pe_shape, block_rows=128):
    """LoadLayer.forward.

    tokens   : (B, N, D)
    ln_gamma, ln_beta : (D,)            LayerNorm affine params
    w1 : (2D, D), b1 : (2D,)            fc1 = nn.Linear(D, 2D)
    w2 : (D, 2D), b2 : (D,)             fc2 = nn.Linear(2D, D)
    pos_emb  : (pe_shape**2, D)
    Returns (tokens_out, pos_emb), matching the PyTorch module.
    """
    if pe_shape <= 30:
        # LoadLayer skips norm+mlp entirely in this configuration.
        return tokens, pos_emb

    B, N, D = tokens.shape
    H = w1.shape[0]

    rows = B * N
    x2d = tokens.reshape(rows, D)

    # Row tile: multiple of 8 (sublane), no larger than the (padded) row count.
    tm = min(block_rows, max(8, ((rows + 7) // 8) * 8))
    n_blocks = pl.cdiv(rows, tm)
    rows_p = n_blocks * tm
    if rows_p != rows:
        x2d = jnp.pad(x2d, ((0, rows_p - rows), (0, 0)))

    # One-time glue: fold the LayerNorm affine into fc1 and pre-transpose the
    # weights to (in, out); biases become 2-D rows for TPU layout rules.
    f32 = jnp.float32
    w1t = (ln_gamma.astype(f32)[:, None] * w1.T.astype(f32)).astype(w1.dtype)
    b1_eff = (ln_beta.astype(f32) @ w1.T.astype(f32)
              + b1.astype(f32)).astype(b1.dtype).reshape(1, H)
    w2t = w2.T                       # (H, D)
    b2_2 = b2.reshape(1, D)

    const = lambda i: (0, 0)         # weights: same block every grid step

    out2d = pl.pallas_call(
        _load_layer_kernel,
        out_shape=jax.ShapeDtypeStruct((rows_p, D), tokens.dtype),
        grid=(n_blocks,),
        in_specs=[
            pl.BlockSpec((tm, D), lambda i: (i, 0)),   # streamed row tile
            pl.BlockSpec((D, H), const),               # gamma-folded w1^T
            pl.BlockSpec((1, H), const),               # folded b1
            pl.BlockSpec((H, D), const),               # w2^T
            pl.BlockSpec((1, D), const),               # b2
        ],
        out_specs=pl.BlockSpec((tm, D), lambda i: (i, 0)),
        compiler_params=pltpu.CompilerParams(
            dimension_semantics=("parallel",)),
    )(x2d, w1t, b1_eff, w2t, b2_2)

    out = out2d[:rows].reshape(B, N, D)
    return out, pos_emb


def _reference(tokens, g, b, w1, b1, w2, b2, pe, *, pe_shape):
    """Pure-JAX reference matching the PyTorch forward (exact erf GELU)."""
    if pe_shape <= 30:
        return tokens, pe
    mu = jnp.mean(tokens, axis=-1, keepdims=True)
    var = jnp.mean((tokens - mu) ** 2, axis=-1, keepdims=True)
    xn = (tokens - mu) / jnp.sqrt(var + _LN_EPS) * g + b
    h = xn @ w1.T + b1
    h = 0.5 * h * (1.0 + jax.lax.erf(h * _INV_SQRT2))
    y = h @ w2.T + b2
    return y, pe


if __name__ == "__main__":
    B, N, D = 2, 64, 128          # batch, tokens, token_dim
    H = 2 * D                     # Mlp hidden = token_dim * 2
    pe_shape = 32                 # > 30 -> norm + mlp branch is active

    key = jax.random.PRNGKey(0)
    kx, kg, kb, k1, k1b, k2, k2b, kp = jax.random.split(key, 8)

    tokens = jax.random.normal(kx, (B, N, D), dtype=jnp.float32)
    ln_gamma = 1.0 + 0.1 * jax.random.normal(kg, (D,), dtype=jnp.float32)
    ln_beta = 0.1 * jax.random.normal(kb, (D,), dtype=jnp.float32)

    bound1 = 1.0 / (D ** 0.5)
    bound2 = 1.0 / (H ** 0.5)
    w1 = jax.random.uniform(k1, (H, D), jnp.float32, -bound1, bound1)
    b1 = jax.random.uniform(k1b, (H,), jnp.float32, -bound1, bound1)
    w2 = jax.random.uniform(k2, (D, H), jnp.float32, -bound2, bound2)
    b2 = jax.random.uniform(k2b, (D,), jnp.float32, -bound2, bound2)

    pos_emb = (jax.random.normal(kp, (pe_shape ** 2, D), dtype=jnp.float32)
               / (D ** 0.5))

    out, pe_out = load_layer(tokens, ln_gamma, ln_beta, w1, b1, w2, b2,
                             pos_emb, pe_shape=pe_shape)
    jax.block_until_ready(out)
    jax.block_until_ready(pe_out)

    ref, ref_pe = _reference(tokens, ln_gamma, ln_beta, w1, b1, w2, b2,
                             pos_emb, pe_shape=pe_shape)
    assert out.shape == (B, N, D)
    assert pe_out.shape == (pe_shape ** 2, D)
    assert jnp.allclose(out, ref, atol=1e-4, rtol=1e-4), "tokens mismatch"
    assert jnp.allclose(pe_out, ref_pe), "positional embedding mismatch"

    print("KERNEL_OK")
</pallas_src>

<mosaic_0001>
module attributes {stable_mosaic.version = 11 : i64} {
  func.func @_load_layer_kernel(%arg0: i32, %arg1: memref<128x128xf32, #tpu.memory_space<vmem>>, %arg2: memref<128x256xf32, #tpu.memory_space<vmem>>, %arg3: memref<1x256xf32, #tpu.memory_space<vmem>>, %arg4: memref<256x128xf32, #tpu.memory_space<vmem>>, %arg5: memref<1x128xf32, #tpu.memory_space<vmem>>, %arg6: memref<128x128xf32, #tpu.memory_space<vmem>>) attributes {dimension_semantics = [#tpu.dimension_semantics<parallel>], iteration_bounds = array<i64: 1>, scalar_prefetch = 0 : i64, scratch_operands = 0 : i64, tpu.core_type = #tpu.core_type<tc>, window_params = [{transform_indices = @transform_0, window_bounds = array<i64: 128, 128>}, {pipeline_mode = #tpu.pipeline_mode<synchronous>, transform_indices = @transform_1, window_bounds = array<i64: 128, 256>}, {pipeline_mode = #tpu.pipeline_mode<synchronous>, transform_indices = @transform_2, window_bounds = array<i64: 1, 256>}, {pipeline_mode = #tpu.pipeline_mode<synchronous>, transform_indices = @transform_3, window_bounds = array<i64: 256, 128>}, {pipeline_mode = #tpu.pipeline_mode<synchronous>, transform_indices = @transform_4, window_bounds = array<i64: 1, 128>}, {transform_indices = @transform_5, window_bounds = array<i64: 128, 128>}]} {
    %c0 = arith.constant 0 : index
    %c0_0 = arith.constant 0 : index
    %0 = vector.load %arg1[%c0, %c0_0] : memref<128x128xf32, #tpu.memory_space<vmem>>, vector<128x128xf32>
    %cst = arith.constant dense<0.000000e+00> : vector<128xf32>
    %1 = vector.multi_reduction <add>, %0, %cst [1] : vector<128x128xf32> to vector<128xf32>
    %2 = vector.shape_cast %1 : vector<128xf32> to vector<128x1xf32>
    %cst_1 = arith.constant 1.280000e+02 : f32
    %3 = vector.broadcast %cst_1 : f32 to vector<128x1xf32>
    %4 = arith.divf %2, %3 : vector<128x1xf32>
    %5 = vector.broadcast %4 : vector<128x1xf32> to vector<128x128xf32>
    %6 = arith.subf %0, %5 : vector<128x128xf32>
    %7 = arith.mulf %6, %6 : vector<128x128xf32>
    %cst_2 = arith.constant dense<0.000000e+00> : vector<128xf32>
    %8 = vector.multi_reduction <add>, %7, %cst_2 [1] : vector<128x128xf32> to vector<128xf32>
    %9 = vector.shape_cast %8 : vector<128xf32> to vector<128x1xf32>
    %cst_3 = arith.constant 1.280000e+02 : f32
    %10 = vector.broadcast %cst_3 : f32 to vector<128x1xf32>
    %11 = arith.divf %9, %10 : vector<128x1xf32>
    %cst_4 = arith.constant 9.99999974E-6 : f32
    %12 = vector.broadcast %cst_4 : f32 to vector<128x1xf32>
    %13 = arith.addf %11, %12 : vector<128x1xf32>
    %14 = math.rsqrt %13 : vector<128x1xf32>
    %15 = vector.broadcast %14 : vector<128x1xf32> to vector<128x128xf32>
    %16 = arith.mulf %6, %15 : vector<128x128xf32>
    %c0_5 = arith.constant 0 : index
    %c0_6 = arith.constant 0 : index
    %17 = vector.load %arg2[%c0_5, %c0_6] : memref<128x256xf32, #tpu.memory_space<vmem>>, vector<128x256xf32>
    %cst_7 = arith.constant dense<0.000000e+00> : vector<128x256xf32>
    %18 = tpu.matmul %16, %17, %cst_7 {dimension_numbers = #tpu.dot_dimension_numbers<[1], [0], [0], [1], [0, 0, 1, 1], [], []>} : vector<128x128xf32>, vector<128x256xf32>, vector<128x256xf32> -> vector<128x256xf32>
    %c0_8 = arith.constant 0 : index
    %c0_9 = arith.constant 0 : index
    %19 = vector.load %arg3[%c0_8, %c0_9] : memref<1x256xf32, #tpu.memory_space<vmem>>, vector<1x256xf32>
    %20 = vector.broadcast %19 : vector<1x256xf32> to vector<128x256xf32>
    %21 = arith.addf %18, %20 : vector<128x256xf32>
    %cst_10 = arith.constant 5.000000e-01 : f32
    %22 = vector.broadcast %cst_10 : f32 to vector<128x256xf32>
    %23 = arith.mulf %22, %21 : vector<128x256xf32>
    %cst_11 = arith.constant 0.707106769 : f32
    %24 = vector.broadcast %cst_11 : f32 to vector<128x256xf32>
    %25 = arith.mulf %21, %24 : vector<128x256xf32>
    %26 = math.absf %25 : vector<128x256xf32>
    %cst_12 = arith.constant 0.327591091 : f32
    %27 = vector.broadcast %cst_12 : f32 to vector<128x256xf32>
    %28 = arith.mulf %27, %26 : vector<128x256xf32>
    %cst_13 = arith.constant 1.000000e+00 : f32
    %29 = vector.broadcast %cst_13 : f32 to vector<128x256xf32>
    %30 = arith.addf %29, %28 : vector<128x256xf32>
    %cst_14 = arith.constant 1.000000e+00 : f32
    %31 = vector.broadcast %cst_14 : f32 to vector<128x256xf32>
    %32 = arith.divf %31, %30 : vector<128x256xf32>
    %cst_15 = arith.constant 1.06140542 : f32
    %33 = vector.broadcast %cst_15 : f32 to vector<128x256xf32>
    %34 = arith.mulf %33, %32 : vector<128x256xf32>
    %cst_16 = arith.constant -1.45315206 : f32
    %35 = vector.broadcast %cst_16 : f32 to vector<128x256xf32>
    %36 = arith.addf %34, %35 : vector<128x256xf32>
    %37 = arith.mulf %36, %32 : vector<128x256xf32>
    %cst_17 = arith.constant 1.42141378 : f32
    %38 = vector.broadcast %cst_17 : f32 to vector<128x256xf32>
    %39 = arith.addf %37, %38 : vector<128x256xf32>
    %40 = arith.mulf %39, %32 : vector<128x256xf32>
    %cst_18 = arith.constant -0.284496725 : f32
    %41 = vector.broadcast %cst_18 : f32 to vector<128x256xf32>
    %42 = arith.addf %40, %41 : vector<128x256xf32>
    %43 = arith.mulf %42, %32 : vector<128x256xf32>
    %cst_19 = arith.constant 0.254829586 : f32
    %44 = vector.broadcast %cst_19 : f32 to vector<128x256xf32>
    %45 = arith.addf %43, %44 : vector<128x256xf32>
    %46 = arith.mulf %45, %32 : vector<128x256xf32>
    %cst_20 = arith.constant 0.000000e+00 : f32
    %47 = vector.broadcast %cst_20 : f32 to vector<128x256xf32>
    %48 = arith.subf %47, %26 : vector<128x256xf32>
    %49 = arith.mulf %48, %26 : vector<128x256xf32>
    %50 = math.exp %49 : vector<128x256xf32>
    %51 = arith.mulf %46, %50 : vector<128x256xf32>
    %cst_21 = arith.constant 1.000000e+00 : f32
    %52 = vector.broadcast %cst_21 : f32 to vector<128x256xf32>
    %53 = arith.subf %52, %51 : vector<128x256xf32>
    %cst_22 = arith.constant 0.000000e+00 : f32
    %54 = vector.broadcast %cst_22 : f32 to vector<128x256xf32>
    %55 = arith.cmpf oge, %25, %54 : vector<128x256xf32>
    %cst_23 = arith.constant 0.000000e+00 : f32
    %56 = vector.broadcast %cst_23 : f32 to vector<128x256xf32>
    %57 = arith.subf %56, %53 : vector<128x256xf32>
    %58 = arith.select %55, %53, %57 : vector<128x256xi1>, vector<128x256xf32>
    %cst_24 = arith.constant 1.000000e+00 : f32
    %59 = vector.broadcast %cst_24 : f32 to vector<128x256xf32>
    %60 = arith.addf %59, %58 : vector<128x256xf32>
    %61 = arith.mulf %23, %60 : vector<128x256xf32>
    %c0_25 = arith.constant 0 : index
    %c0_26 = arith.constant 0 : index
    %62 = vector.load %arg4[%c0_25, %c0_26] : memref<256x128xf32, #tpu.memory_space<vmem>>, vector<256x128xf32>
    %cst_27 = arith.constant dense<0.000000e+00> : vector<128x128xf32>
    %63 = tpu.matmul %61, %62, %cst_27 {dimension_numbers = #tpu.dot_dimension_numbers<[1], [0], [0], [1], [0, 0, 1, 1], [], []>} : vector<128x256xf32>, vector<256x128xf32>, vector<128x128xf32> -> vector<128x128xf32>
    %c0_28 = arith.constant 0 : index
    %c0_29 = arith.constant 0 : index
    %64 = vector.load %arg5[%c0_28, %c0_29] : memref<1x128xf32, #tpu.memory_space<vmem>>, vector<1x128xf32>
    %65 = vector.broadcast %64 : vector<1x128xf32> to vector<128x128xf32>
    %66 = arith.addf %63, %65 : vector<128x128xf32>
    %c0_30 = arith.constant 0 : index
    %c0_31 = arith.constant 0 : index
    %67 = vector.load %arg6[%c0_30, %c0_31] : memref<128x128xf32, #tpu.memory_space<vmem>>, vector<128x128xf32>
    tpu.vector_store %arg6[%c0_30, %c0_31], %66 {strides = array<i32>} : memref<128x128xf32, #tpu.memory_space<vmem>>, vector<128x128xf32>,
    return
  }
  func.func @transform_0(%arg0: i32) -> (i32, i32) {
    %c0_i32 = arith.constant 0 : i32
    %c0_i32_0 = arith.constant 0 : i32
    return %arg0, %c0_i32 : i32, i32
  }
  func.func @transform_1(%arg0: i32) -> (i32, i32) {
    %c0_i32 = arith.constant 0 : i32
    %c0_i32_0 = arith.constant 0 : i32
    %c0_i32_1 = arith.constant 0 : i32
    return %c0_i32, %c0_i32_0 : i32, i32
  }
  func.func @transform_2(%arg0: i32) -> (i32, i32) {
    %c0_i32 = arith.constant 0 : i32
    %c0_i32_0 = arith.constant 0 : i32
    %c0_i32_1 = arith.constant 0 : i32
    return %c0_i32, %c0_i32_0 : i32, i32
  }
  func.func @transform_3(%arg0: i32) -> (i32, i32) {
    %c0_i32 = arith.constant 0 : i32
    %c0_i32_0 = arith.constant 0 : i32
    %c0_i32_1 = arith.constant 0 : i32
    return %c0_i32, %c0_i32_0 : i32, i32
  }
  func.func @transform_4(%arg0: i32) -> (i32, i32) {
    %c0_i32 = arith.constant 0 : i32
    %c0_i32_0 = arith.constant 0 : i32
    %c0_i32_1 = arith.constant 0 : i32
    return %c0_i32, %c0_i32_0 : i32, i32
  }
  func.func @transform_5(%arg0: i32) -> (i32, i32) {
    %c0_i32 = arith.constant 0 : i32
    %c0_i32_0 = arith.constant 0 : i32
    return %arg0, %c0_i32 : i32, i32
  }
}

</mosaic_0001>

<llo_original>
// kernel: tpu_custom_call.1
$region0: #{tpu_custom_call.1}
  #allocation0 [shape = 'u32[]', space=smem, size = 0x4, offset = 0x4, fixed_abs, tag = 'smem constant byte address 0x4 - core index']
  #allocation1 [shape = 'u32[144,128]{1,0:T(1,128)}', space=vmem, size = 0x12000, scoped, tag = 'internal scratch']
  %s0 = inlined_call_operand.hbm [shape: f32[128,128], index: 0, kind: input, shape index: {}]
  %s1 = inlined_call_operand.hbm [shape: f32[128,256], index: 1, kind: input, shape index: {}]
  %s2 = inlined_call_operand.vmem [shape: f32[1,256], index: 2, kind: input, shape index: {}]
  %s3 = inlined_call_operand.hbm [shape: f32[256,128], index: 3, kind: input, shape index: {}]
  %s4 = inlined_call_operand.vmem [shape: f32[1,128], index: 4, kind: input, shape index: {}]
  %s5 = inlined_call_operand.hbm [shape: f32[128,128], index: 5, kind: output, shape index: {}]
  %s6 = sld [smem:[#allocation0]]
  $region42: #{tpu_custom_call.1} parent=0
    _
  %s8 = ssub.s32 1, %s6
  %s9 = scalar_select 0, %s8, %s6
  $region1: #{tpu_custom_call.1} parent=0
    #allocation2 [shape = 'u8[65536]{0}', space=vmem, size = 0x10000, scoped, tag = 'input window, operand 0, single buffered']
    #allocation3 [shape = 's32[1]{0}', space=sflag, size = 0x4, scoped, tag = 'scoped memory for tpu_custom_call.1']
    #allocation4 [shape = 's32[1]{0}', space=sflag, size = 0x4, scoped, tag = 'scoped memory for tpu_custom_call.1']
    #allocation5 [shape = 'u8[131072]{0}', space=vmem, size = 0x20000, scoped, tag = 'input window, operand 1, single buffered']
    #allocation6 [shape = 's32[1]{0}', space=sflag, size = 0x4, scoped, tag = 'scoped memory for tpu_custom_call.1']
    #allocation7 [shape = 'u8[131072]{0}', space=vmem, size = 0x20000, scoped, tag = 'input window, operand 3, single buffered']
    #allocation8 [shape = 'u8[65536]{0}', space=vmem, size = 0x10000, scoped, tag = 'output window, operand 0, single buffered']
    %10 = vsyncpa [#allocation3], 0
    %11 = vsyncpa [#allocation6], 0
    %12 = vsyncpa [#allocation4], 0
    // Predicated region
    $region2: #{tpu_custom_call.1} parent=1 // pred_check
      _
    $region3: #{tpu_custom_call.1} parent=1 // pred_check_branch
      %14 = sbr.rel (0) target = $region5
    $region4: #{tpu_custom_call.1} parent=1 // pred_region
      %s16 = ssub.s32 2048, 2048
      %17 = vsyncadd [#allocation3], %s16
      %s18 = sshll.u32 [#allocation2], 4
      %s19 = int_to_ptr.vmem [resolvable:$true] %s18
      %24 = dma.hbm_to_vmem [thread:$0]  %s0, 2048, %s19, [#allocation3], 128, 128, 8
    $region5: #{tpu_custom_call.1} parent=1 // pred_fallthru
      _
    // Predicated region
    $region6: #{tpu_custom_call.1} parent=1 // pred_check
      _
    $region7: #{tpu_custom_call.1} parent=1 // pred_check_branch
      %26 = sbr.rel (0) target = $region9
    $region8: #{tpu_custom_call.1} parent=1 // pred_region
      %s28 = ssub.s32 4096, 4096
      %29 = vsyncadd [#allocation6], %s28
      %s30 = sshll.u32 [#allocation5], 4
      %s31 = int_to_ptr.vmem [resolvable:$true] %s30
      %36 = dma.hbm_to_vmem [thread:$0]  %s1, 4096, %s31, [#allocation6], 256, 256, 16
    $region9: #{tpu_custom_call.1} parent=1 // pred_fallthru
      _
    // Predicated region
    $region10: #{tpu_custom_call.1} parent=1 // pred_check
      _
    $region11: #{tpu_custom_call.1} parent=1 // pred_check_branch
      %38 = sbr.rel (0) target = $region13
    $region12: #{tpu_custom_call.1} parent=1 // pred_region
      _
    $region13: #{tpu_custom_call.1} parent=1 // pred_fallthru
      _
    // Predicated region
    $region14: #{tpu_custom_call.1} parent=1 // pred_check
      _
    $region15: #{tpu_custom_call.1} parent=1 // pred_check_branch
      %40 = sbr.rel (0) target = $region17
    $region16: #{tpu_custom_call.1} parent=1 // pred_region
      %s42 = ssub.s32 4096, 4096
      %43 = vsyncadd [#allocation6], %s42
      %s44 = sshll.u32 [#allocation7], 4
      %s45 = int_to_ptr.vmem [resolvable:$true] %s44
      %50 = dma.hbm_to_vmem [thread:$0]  %s3, 4096, %s45, [#allocation6], 128, 128, 8
    $region17: #{tpu_custom_call.1} parent=1 // pred_fallthru
      _
    // Predicated region
    $region18: #{tpu_custom_call.1} parent=1 // pred_check
      _
    $region19: #{tpu_custom_call.1} parent=1 // pred_check_branch
      %52 = sbr.rel (0) target = $region21
    $region20: #{tpu_custom_call.1} parent=1 // pred_region
      _
    $region21: #{tpu_custom_call.1} parent=1 // pred_fallthru
      _
    // Predicated region
    $region22: #{tpu_custom_call.1} parent=1 // pred_check
      _
    $region23: #{tpu_custom_call.1} parent=1 // pred_check_branch
      %54 = sbr.rel (0) target = $region25
    $region24: #{tpu_custom_call.1} parent=1 // pred_region
      %55 = dma.done [#allocation3], 2048
    $region25: #{tpu_custom_call.1} parent=1 // pred_fallthru
      _
    // Predicated region
    $region26: #{tpu_custom_call.1} parent=1 // pred_check
      _
    $region27: #{tpu_custom_call.1} parent=1 // pred_check_branch
      %57 = sbr.rel (0) target = $region29
    $region28: #{tpu_custom_call.1} parent=1 // pred_region
      %58 = dma.done [#allocation6], 4096
    $region29: #{tpu_custom_call.1} parent=1 // pred_fallthru
      _
    // Predicated region
    $region30: #{tpu_custom_call.1} parent=1 // pred_check
      _
    $region31: #{tpu_custom_call.1} parent=1 // pred_check_branch
      %60 = sbr.rel (0) target = $region33
    $region32: #{tpu_custom_call.1} parent=1 // pred_region
      %61 = dma.done [#allocation6], 4096
    $region33: #{tpu_custom_call.1} parent=1 // pred_fallthru
      _
    %v62 = vld [vmem:[#allocation2] sm:$0xff]
    %v63 = vld [vmem:[#allocation2 + $0x8] sm:$0xff]
    %v64 = vld [vmem:[#allocation2 + $0x10] sm:$0xff]
    %v65 = vld [vmem:[#allocation2 + $0x18] sm:$0xff]
    %v66 = vld [vmem:[#allocation2 + $0x20] sm:$0xff]
    %v67 = vld [vmem:[#allocation2 + $0x28] sm:$0xff]
    %v68 = vld [vmem:[#allocation2 + $0x30] sm:$0xff]
    %v69 = vld [vmem:[#allocation2 + $0x38] sm:$0xff]
    %v70 = vld [vmem:[#allocation2 + $0x40] sm:$0xff]
    %v71 = vld [vmem:[#allocation2 + $0x48] sm:$0xff]
    %v72 = vld [vmem:[#allocation2 + $0x50] sm:$0xff]
    %v73 = vld [vmem:[#allocation2 + $0x58] sm:$0xff]
    %v74 = vld [vmem:[#allocation2 + $0x60] sm:$0xff]
    %v75 = vld [vmem:[#allocation2 + $0x68] sm:$0xff]
    %v76 = vld [vmem:[#allocation2 + $0x70] sm:$0xff]
    %v77 = vld [vmem:[#allocation2 + $0x78] sm:$0xff]
    %78 = vadd.xlane.f32.xlu0 %v62
    %v79 = vpop.xlane.xlu0 %78
    %80 = vadd.xlane.f32.xlu0 %v63
    %v81 = vpop.xlane.xlu0 %80
    %82 = vadd.xlane.f32.xlu0 %v64
    %v83 = vpop.xlane.xlu0 %82
    %84 = vadd.xlane.f32.xlu0 %v65
    %v85 = vpop.xlane.xlu0 %84
    %86 = vadd.xlane.f32.xlu0 %v66
    %v87 = vpop.xlane.xlu0 %86
    %88 = vadd.xlane.f32.xlu0 %v67
    %v89 = vpop.xlane.xlu0 %88
    %90 = vadd.xlane.f32.xlu0 %v68
    %v91 = vpop.xlane.xlu0 %90
    %92 = vadd.xlane.f32.xlu0 %v69
    %v93 = vpop.xlane.xlu0 %92
    %94 = vadd.xlane.f32.xlu0 %v70
    %v95 = vpop.xlane.xlu0 %94
    %96 = vadd.xlane.f32.xlu0 %v71
    %v97 = vpop.xlane.xlu0 %96
    %98 = vadd.xlane.f32.xlu0 %v72
    %v99 = vpop.xlane.xlu0 %98
    %100 = vadd.xlane.f32.xlu0 %v73
    %v101 = vpop.xlane.xlu0 %100
    %102 = vadd.xlane.f32.xlu0 %v74
    %v103 = vpop.xlane.xlu0 %102
    %104 = vadd.xlane.f32.xlu0 %v75
    %v105 = vpop.xlane.xlu0 %104
    %106 = vadd.xlane.f32.xlu0 %v76
    %v107 = vpop.xlane.xlu0 %106
    %108 = vadd.xlane.f32.xlu0 %v77
    %v109 = vpop.xlane.xlu0 %108
    %v110 = vrcp.pop 128.0
    %v111 = vmul.f32 %v79, %v110
    %v112 = vmul.f32 %v81, %v110
    %v113 = vmul.f32 %v83, %v110
    %v114 = vmul.f32 %v85, %v110
    %v115 = vmul.f32 %v87, %v110
    %v116 = vmul.f32 %v89, %v110
    %v117 = vmul.f32 %v91, %v110
    %v118 = vmul.f32 %v93, %v110
    %v119 = vmul.f32 %v95, %v110
    %v120 = vmul.f32 %v97, %v110
    %v121 = vmul.f32 %v99, %v110
    %v122 = vmul.f32 %v101, %v110
    %v123 = vmul.f32 %v103, %v110
    %v124 = vmul.f32 %v105, %v110
    %v125 = vmul.f32 %v107, %v110
    %v126 = vmul.f32 %v109, %v110
    %v127 = vsub.f32 %v62, %v111
    %v128 = vsub.f32 %v63, %v112
    %v129 = vsub.f32 %v64, %v113
    %v130 = vsub.f32 %v65, %v114
    %v131 = vsub.f32 %v66, %v115
    %v132 = vsub.f32 %v67, %v116
    %v133 = vsub.f32 %v68, %v117
    %v134 = vsub.f32 %v69, %v118
    %v135 = vsub.f32 %v70, %v119
    %v136 = vsub.f32 %v71, %v120
    %v137 = vsub.f32 %v72, %v121
    %v138 = vsub.f32 %v73, %v122
    %v139 = vsub.f32 %v74, %v123
    %v140 = vsub.f32 %v75, %v124
    %v141 = vsub.f32 %v76, %v125
    %v142 = vsub.f32 %v77, %v126
    %v143 = vmul.f32 %v127, %v127
    %v144 = vmul.f32 %v128, %v128
    %v145 = vmul.f32 %v129, %v129
    %v146 = vmul.f32 %v130, %v130
    %v147 = vmul.f32 %v131, %v131
    %v148 = vmul.f32 %v132, %v132
    %v149 = vmul.f32 %v133, %v133
    %v150 = vmul.f32 %v134, %v134
    %v151 = vmul.f32 %v135, %v135
    %v152 = vmul.f32 %v136, %v136
    %v153 = vmul.f32 %v137, %v137
    %v154 = vmul.f32 %v138, %v138
    %v155 = vmul.f32 %v139, %v139
    %v156 = vmul.f32 %v140, %v140
    %v157 = vmul.f32 %v141, %v141
    %v158 = vmul.f32 %v142, %v142
    %159 = vadd.xlane.f32.xlu0 %v143
    %v160 = vpop.xlane.xlu0 %159
    %161 = vadd.xlane.f32.xlu0 %v144
    %v162 = vpop.xlane.xlu0 %161
    %163 = vadd.xlane.f32.xlu0 %v145
    %v164 = vpop.xlane.xlu0 %163
    %165 = vadd.xlane.f32.xlu0 %v146
    %v166 = vpop.xlane.xlu0 %165
    %167 = vadd.xlane.f32.xlu0 %v147
    %v168 = vpop.xlane.xlu0 %167
    %169 = vadd.xlane.f32.xlu0 %v148
    %v170 = vpop.xlane.xlu0 %169
    %171 = vadd.xlane.f32.xlu0 %v149
    %v172 = vpop.xlane.xlu0 %171
    %173 = vadd.xlane.f32.xlu0 %v150
    %v174 = vpop.xlane.xlu0 %173
    %175 = vadd.xlane.f32.xlu0 %v151
    %v176 = vpop.xlane.xlu0 %175
    %177 = vadd.xlane.f32.xlu0 %v152
    %v178 = vpop.xlane.xlu0 %177
    %179 = vadd.xlane.f32.xlu0 %v153
    %v180 = vpop.xlane.xlu0 %179
    %181 = vadd.xlane.f32.xlu0 %v154
    %v182 = vpop.xlane.xlu0 %181
    %183 = vadd.xlane.f32.xlu0 %v155
    %v184 = vpop.xlane.xlu0 %183
    %185 = vadd.xlane.f32.xlu0 %v156
    %v186 = vpop.xlane.xlu0 %185
    %187 = vadd.xlane.f32.xlu0 %v157
    %v188 = vpop.xlane.xlu0 %187
    %189 = vadd.xlane.f32.xlu0 %v158
    %v190 = vpop.xlane.xlu0 %189
    %v191 = vmul.f32 %v160, %v110
    %v192 = vmul.f32 %v162, %v110
    %v193 = vmul.f32 %v164, %v110
    %v194 = vmul.f32 %v166, %v110
    %v195 = vmul.f32 %v168, %v110
    %v196 = vmul.f32 %v170, %v110
    %v197 = vmul.f32 %v172, %v110
    %v198 = vmul.f32 %v174, %v110
    %v199 = vmul.f32 %v176, %v110
    %v200 = vmul.f32 %v178, %v110
    %v201 = vmul.f32 %v180, %v110
    %v202 = vmul.f32 %v182, %v110
    %v203 = vmul.f32 %v184, %v110
    %v204 = vmul.f32 %v186, %v110
    %v205 = vmul.f32 %v188, %v110
    %v206 = vmul.f32 %v190, %v110
    %v207 = vadd.f32 %v191, 1e-05
    %v208 = vadd.f32 %v192, 1e-05
    %v209 = vadd.f32 %v193, 1e-05
    %v210 = vadd.f32 %v194, 1e-05
    %v211 = vadd.f32 %v195, 1e-05
    %v212 = vadd.f32 %v196, 1e-05
    %v213 = vadd.f32 %v197, 1e-05
    %v214 = vadd.f32 %v198, 1e-05
    %v215 = vadd.f32 %v199, 1e-05
    %v216 = vadd.f32 %v200, 1e-05
    %v217 = vadd.f32 %v201, 1e-05
    %v218 = vadd.f32 %v202, 1e-05
    %v219 = vadd.f32 %v203, 1e-05
    %v220 = vadd.f32 %v204, 1e-05
    %v221 = vadd.f32 %v205, 1e-05
    %v222 = vadd.f32 %v206, 1e-05
    %v223 = vrsqrt.pop %v207
    %v224 = vrsqrt.pop %v208
    %v225 = vrsqrt.pop %v209
    %v226 = vrsqrt.pop %v210
    %v227 = vrsqrt.pop %v211
    %v228 = vrsqrt.pop %v212
    %v229 = vrsqrt.pop %v213
    %v230 = vrsqrt.pop %v214
    %v231 = vrsqrt.pop %v215
    %v232 = vrsqrt.pop %v216
    %v233 = vrsqrt.pop %v217
    %v234 = vrsqrt.pop %v218
    %v235 = vrsqrt.pop %v219
    %v236 = vrsqrt.pop %v220
    %v237 = vrsqrt.pop %v221
    %v238 = vrsqrt.pop %v222
    %v239 = vmul.f32 %v127, %v223
    %v240 = vmul.f32 %v128, %v224
    %v241 = vmul.f32 %v129, %v225
    %v242 = vmul.f32 %v130, %v226
    %v243 = vmul.f32 %v131, %v227
    %v244 = vmul.f32 %v132, %v228
    %v245 = vmul.f32 %v133, %v229
    %v246 = vmul.f32 %v134, %v230
    %v247 = vmul.f32 %v135, %v231
    %v248 = vmul.f32 %v136, %v232
    %v249 = vmul.f32 %v137, %v233
    %v250 = vmul.f32 %v138, %v234
    %v251 = vmul.f32 %v139, %v235
    %v252 = vmul.f32 %v140, %v236
    %v253 = vmul.f32 %v141, %v237
    %v254 = vmul.f32 %v142, %v238
    %v255 = vld [vmem:[#allocation5] sm:$0xff]
    %v256 = vld [vmem:[#allocation5 + $0x8] sm:$0xff]
    %v257 = vld [vmem:[#allocation5 + $0x10] sm:$0xff]
    %v258 = vld [vmem:[#allocation5 + $0x18] sm:$0xff]
    %v259 = vld [vmem:[#allocation5 + $0x20] sm:$0xff]
    %v260 = vld [vmem:[#allocation5 + $0x28] sm:$0xff]
    %v261 = vld [vmem:[#allocation5 + $0x30] sm:$0xff]
    %v262 = vld [vmem:[#allocation5 + $0x38] sm:$0xff]
    %v263 = vld [vmem:[#allocation5 + $0x40] sm:$0xff]
    %v264 = vld [vmem:[#allocation5 + $0x48] sm:$0xff]
    %v265 = vld [vmem:[#allocation5 + $0x50] sm:$0xff]
    %v266 = vld [vmem:[#allocation5 + $0x58] sm:$0xff]
    %v267 = vld [vmem:[#allocation5 + $0x60] sm:$0xff]
    %v268 = vld [vmem:[#allocation5 + $0x68] sm:$0xff]
    %v269 = vld [vmem:[#allocation5 + $0x70] sm:$0xff]
    %v270 = vld [vmem:[#allocation5 + $0x78] sm:$0xff]
    %v271 = vld [vmem:[#allocation5 + $0x80] sm:$0xff]
    %v272 = vld [vmem:[#allocation5 + $0x88] sm:$0xff]
    %v273 = vld [vmem:[#allocation5 + $0x90] sm:$0xff]
    %v274 = vld [vmem:[#allocation5 + $0x98] sm:$0xff]
    %v275 = vld [vmem:[#allocation5 + $0xa0] sm:$0xff]
    %v276 = vld [vmem:[#allocation5 + $0xa8] sm:$0xff]
    %v277 = vld [vmem:[#allocation5 + $0xb0] sm:$0xff]
    %v278 = vld [vmem:[#allocation5 + $0xb8] sm:$0xff]
    %v279 = vld [vmem:[#allocation5 + $0xc0] sm:$0xff]
    %v280 = vld [vmem:[#allocation5 + $0xc8] sm:$0xff]
    %v281 = vld [vmem:[#allocation5 + $0xd0] sm:$0xff]
    %v282 = vld [vmem:[#allocation5 + $0xd8] sm:$0xff]
    %v283 = vld [vmem:[#allocation5 + $0xe0] sm:$0xff]
    %v284 = vld [vmem:[#allocation5 + $0xe8] sm:$0xff]
    %v285 = vld [vmem:[#allocation5 + $0xf0] sm:$0xff]
    %v286 = vld [vmem:[#allocation5 + $0xf8] sm:$0xff]
    %v287 = vld [vmem:[%s2] sm:$0x3]
    %v289 = vlaneseq
    %v290 = vshrl.u32 %v289, 7
    %v291 = vsub.s32 0, %v290
    %v292 = vrot.slane %v287, %v291
    %v293 = vlaneseq
    %v294 = vshrl.u32 %v293, 7
    %v295 = vsub.s32 1, %v294
    %v296 = vrot.slane %v287, %v295
    %299 = vmatprep.subr.mxu0 %v286
    %300 = vmatpush1.msra.mxu0 %v285
    %301 = vmatprep.subr.mxu0 %v284
    %302 = vmatpush1.msra.mxu0 %v283
    %303 = vmatprep.subr.mxu0 %v282
    %304 = vmatpush1.msra.mxu0 %v281
    %305 = vmatprep.subr.mxu0 %v280
    %306 = vmatpush1.msra.mxu0 %v279
    %307 = vmatprep.subr.mxu0 %v278
    %308 = vmatpush1.msra.mxu0 %v277
    %309 = vmatprep.subr.mxu0 %v276
    %310 = vmatpush1.msra.mxu0 %v275
    %311 = vmatprep.subr.mxu0 %v274
    %312 = vmatpush1.msra.mxu0 %v273
    %313 = vmatprep.subr.mxu0 %v272
    %314 = vmatpush1.msra.mxu0 %v271
    %315 = vmatprep.subr.mxu0 %v270
    %316 = vmatpush1.msra.mxu0 %v269
    %317 = vmatprep.subr.mxu0 %v268
    %318 = vmatpush1.msra.mxu0 %v267
    %319 = vmatprep.subr.mxu0 %v266
    %320 = vmatpush1.msra.mxu0 %v265
    %321 = vmatprep.subr.mxu0 %v264
    %322 = vmatpush1.msra.mxu0 %v263
    %323 = vmatprep.subr.mxu0 %v262
    %324 = vmatpush1.msra.mxu0 %v261
    %325 = vmatprep.subr.mxu0 %v260
    %326 = vmatpush1.msra.mxu0 %v259
    %327 = vmatprep.subr.mxu0 %v258
    %328 = vmatpush1.msra.mxu0 %v257
    %329 = vmatprep.subr.mxu0 %v256
    %330 = vmatpush1.msra.mxu0 %v255
    %331 = vmatprep.subr.mxu0 0.0
    %332 = vmatpush2.msra.mxu0 0.0
    %333 = vmatprep.subr.mxu0 0.0
    %334 = vmatpush2.msra.mxu0 0.0
    %335 = vmatprep.subr.mxu0 0.0
    %336 = vmatpush2.msra.mxu0 0.0
    %337 = vmatprep.subr.mxu0 0.0
    %338 = vmatpush2.msra.mxu0 0.0
    %339 = vmatprep.subr.mxu0 0.0
    %340 = vmatpush2.msra.mxu0 0.0
    %341 = vmatprep.subr.mxu0 0.0
    %342 = vmatpush2.msra.mxu0 0.0
    %343 = vmatprep.subr.mxu0 0.0
    %344 = vmatpush2.msra.mxu0 0.0
    %345 = vmatprep.subr.mxu0 0.0
    %346 = vmatpush2.msra.mxu0 0.0
    %347 = vmatprep.subr.mxu0 0.0
    %348 = vmatpush2.msra.mxu0 0.0
    %349 = vmatprep.subr.mxu0 0.0
    %350 = vmatpush2.msra.mxu0 0.0
    %351 = vmatprep.subr.mxu0 0.0
    %352 = vmatpush2.msra.mxu0 0.0
    %353 = vmatprep.subr.mxu0 0.0
    %354 = vmatpush2.msra.mxu0 0.0
    %355 = vmatprep.subr.mxu0 0.0
    %356 = vmatpush2.msra.mxu0 0.0
    %357 = vmatprep.subr.mxu0 0.0
    %358 = vmatpush2.msra.mxu0 0.0
    %359 = vmatprep.subr.mxu0 0.0
    %360 = vmatpush2.msra.mxu0 0.0
    %361 = vmatprep.subr.mxu0 0.0
    %362 = vmatpush2.msra.mxu0 0.0
    %363 = vmatprep.mubr.f32.mxu0 0.0
    %364 = vmatmul.mubr.f32.gmra.mxu0 %v239
    %v365 = vpop.f32.mrf.mxu0
    %v366 = vadd.f32 %v292, %v365
    %v367 = vpop.f32.mrf.mxu0
    %v368 = vadd.f32 %v296, %v367
    %369 = vmatprep.mubr.f32.mxu0 0.0
    %370 = vmatmul.mubr.f32.gmra.mxu0 %v240
    %v371 = vpop.f32.mrf.mxu0
    %v372 = vadd.f32 %v292, %v371
    %v373 = vpop.f32.mrf.mxu0
    %v374 = vadd.f32 %v296, %v373
    %375 = vmatprep.mubr.f32.mxu0 0.0
    %376 = vmatmul.mubr.f32.gmra.mxu0 %v241
    %v377 = vpop.f32.mrf.mxu0
    %v378 = vadd.f32 %v292, %v377
    %v379 = vpop.f32.mrf.mxu0
    %v380 = vadd.f32 %v296, %v379
    %381 = vmatprep.mubr.f32.mxu0 0.0
    %382 = vmatmul.mubr.f32.gmra.mxu0 %v242
    %v383 = vpop.f32.mrf.mxu0
    %v384 = vadd.f32 %v292, %v383
    %v385 = vpop.f32.mrf.mxu0
    %v386 = vadd.f32 %v296, %v385
    %387 = vmatprep.mubr.f32.mxu0 0.0
    %388 = vmatmul.mubr.f32.gmra.mxu0 %v243
    %v389 = vpop.f32.mrf.mxu0
    %v390 = vadd.f32 %v292, %v389
    %v391 = vpop.f32.mrf.mxu0
    %v392 = vadd.f32 %v296, %v391
    %393 = vmatprep.mubr.f32.mxu0 0.0
    %394 = vmatmul.mubr.f32.gmra.mxu0 %v244
    %v395 = vpop.f32.mrf.mxu0
    %v396 = vadd.f32 %v292, %v395
    %v397 = vpop.f32.mrf.mxu0
    %v398 = vadd.f32 %v296, %v397
    %399 = vmatprep.mubr.f32.mxu0 0.0
    %400 = vmatmul.mubr.f32.gmra.mxu0 %v245
    %v401 = vpop.f32.mrf.mxu0
    %v402 = vadd.f32 %v292, %v401
    %v403 = vpop.f32.mrf.mxu0
    %v404 = vadd.f32 %v296, %v403
    %405 = vmatprep.mubr.f32.mxu0 0.0
    %406 = vmatmul.mubr.f32.gmra.mxu0 %v246
    %v407 = vpop.f32.mrf.mxu0
    %v408 = vadd.f32 %v292, %v407
    %v409 = vpop.f32.mrf.mxu0
    %v410 = vadd.f32 %v296, %v409
    %411 = vmatprep.mubr.f32.mxu0 0.0
    %412 = vmatmul.mubr.f32.gmra.mxu0 %v247
    %v413 = vpop.f32.mrf.mxu0
    %v414 = vadd.f32 %v292, %v413
    %v415 = vpop.f32.mrf.mxu0
    %v416 = vadd.f32 %v296, %v415
    %417 = vmatprep.mubr.f32.mxu0 0.0
    %418 = vmatmul.mubr.f32.gmra.mxu0 %v248
    %v419 = vpop.f32.mrf.mxu0
    %v420 = vadd.f32 %v292, %v419
    %v421 = vpop.f32.mrf.mxu0
    %v422 = vadd.f32 %v296, %v421
    %423 = vmatprep.mubr.f32.mxu0 0.0
    %424 = vmatmul.mubr.f32.gmra.mxu0 %v249
    %v425 = vpop.f32.mrf.mxu0
    %v426 = vadd.f32 %v292, %v425
    %v427 = vpop.f32.mrf.mxu0
    %v428 = vadd.f32 %v296, %v427
    %429 = vmatprep.mubr.f32.mxu0 0.0
    %430 = vmatmul.mubr.f32.gmra.mxu0 %v250
    %v431 = vpop.f32.mrf.mxu0
    %v432 = vadd.f32 %v292, %v431
    %v433 = vpop.f32.mrf.mxu0
    %v434 = vadd.f32 %v296, %v433
    %435 = vmatprep.mubr.f32.mxu0 0.0
    %436 = vmatmul.mubr.f32.gmra.mxu0 %v251
    %v437 = vpop.f32.mrf.mxu0
    %v438 = vadd.f32 %v292, %v437
    %v439 = vpop.f32.mrf.mxu0
    %v440 = vadd.f32 %v296, %v439
    %441 = vmatprep.mubr.f32.mxu0 0.0
    %442 = vmatmul.mubr.f32.gmra.mxu0 %v252
    %v443 = vpop.f32.mrf.mxu0
    %v444 = vadd.f32 %v292, %v443
    %v445 = vpop.f32.mrf.mxu0
    %v446 = vadd.f32 %v296, %v445
    %447 = vmatprep.mubr.f32.mxu0 0.0
    %448 = vmatmul.mubr.f32.gmra.mxu0 %v253
    %v449 = vpop.f32.mrf.mxu0
    %v450 = vadd.f32 %v292, %v449
    %v451 = vpop.f32.mrf.mxu0
    %v452 = vadd.f32 %v296, %v451
    %453 = vmatprep.mubr.f32.mxu0 0.0
    %454 = vmatmul.mubr.f32.gmra.mxu0 %v254
    %v455 = vpop.f32.mrf.mxu0
    %v456 = vadd.f32 %v292, %v455
    %v457 = vpop.f32.mrf.mxu0
    %v458 = vadd.f32 %v296, %v457
    %459 = vdwg.mxu0
    %v460 = vmul.f32 %v366, 0.5
    %v461 = vmul.f32 %v368, 0.5
    %v462 = vmul.f32 %v372, 0.5
    %v463 = vmul.f32 %v374, 0.5
    %v464 = vmul.f32 %v378, 0.5
    %v465 = vmul.f32 %v380, 0.5
    %v466 = vmul.f32 %v384, 0.5
    %v467 = vmul.f32 %v386, 0.5
    %v468 = vmul.f32 %v390, 0.5
    %v469 = vmul.f32 %v392, 0.5
    %v470 = vmul.f32 %v396, 0.5
    %v471 = vmul.f32 %v398, 0.5
    %v472 = vmul.f32 %v402, 0.5
    %v473 = vmul.f32 %v404, 0.5
    %v474 = vmul.f32 %v408, 0.5
    %v475 = vmul.f32 %v410, 0.5
    %v476 = vmul.f32 %v414, 0.5
    %v477 = vmul.f32 %v416, 0.5
    %v478 = vmul.f32 %v420, 0.5
    %v479 = vmul.f32 %v422, 0.5
    %v480 = vmul.f32 %v426, 0.5
    %v481 = vmul.f32 %v428, 0.5
    %v482 = vmul.f32 %v432, 0.5
    %v483 = vmul.f32 %v434, 0.5
    %v484 = vmul.f32 %v438, 0.5
    %v485 = vmul.f32 %v440, 0.5
    %v486 = vmul.f32 %v444, 0.5
    %v487 = vmul.f32 %v446, 0.5
    %v488 = vmul.f32 %v450, 0.5
    %v489 = vmul.f32 %v452, 0.5
    %v490 = vmul.f32 %v456, 0.5
    %v491 = vmul.f32 %v458, 0.5
    %v492 = vmul.f32 %v366, 0.70710677
    %v493 = vmul.f32 %v368, 0.70710677
    %v494 = vmul.f32 %v372, 0.70710677
    %v495 = vmul.f32 %v374, 0.70710677
    %v496 = vmul.f32 %v378, 0.70710677
    %v497 = vmul.f32 %v380, 0.70710677
    %v498 = vmul.f32 %v384, 0.70710677
    %v499 = vmul.f32 %v386, 0.70710677
    %v500 = vmul.f32 %v390, 0.70710677
    %v501 = vmul.f32 %v392, 0.70710677
    %v502 = vmul.f32 %v396, 0.70710677
    %v503 = vmul.f32 %v398, 0.70710677
    %v504 = vmul.f32 %v402, 0.70710677
    %v505 = vmul.f32 %v404, 0.70710677
    %v506 = vmul.f32 %v408, 0.70710677
    %v507 = vmul.f32 %v410, 0.70710677
    %v508 = vmul.f32 %v414, 0.70710677
    %v509 = vmul.f32 %v416, 0.70710677
    %v510 = vmul.f32 %v420, 0.70710677
    %v511 = vmul.f32 %v422, 0.70710677
    %v512 = vmul.f32 %v426, 0.70710677
    %v513 = vmul.f32 %v428, 0.70710677
    %v514 = vmul.f32 %v432, 0.70710677
    %v515 = vmul.f32 %v434, 0.70710677
    %v516 = vmul.f32 %v438, 0.70710677
    %v517 = vmul.f32 %v440, 0.70710677
    %v518 = vmul.f32 %v444, 0.70710677
    %v519 = vmul.f32 %v446, 0.70710677
    %v520 = vmul.f32 %v450, 0.70710677
    %v521 = vmul.f32 %v452, 0.70710677
    %v522 = vmul.f32 %v456, 0.70710677
    %v523 = vmul.f32 %v458, 0.70710677
    %v524 = vand.u32 2147483647, %v492
    %v525 = vand.u32 2147483647, %v493
    %v526 = vand.u32 2147483647, %v494
    %v527 = vand.u32 2147483647, %v495
    %v528 = vand.u32 2147483647, %v496
    %v529 = vand.u32 2147483647, %v497
    %v530 = vand.u32 2147483647, %v498
    %v531 = vand.u32 2147483647, %v499
    %v532 = vand.u32 2147483647, %v500
    %v533 = vand.u32 2147483647, %v501
    %v534 = vand.u32 2147483647, %v502
    %v535 = vand.u32 2147483647, %v503
    %v536 = vand.u32 2147483647, %v504
    %v537 = vand.u32 2147483647, %v505
    %v538 = vand.u32 2147483647, %v506
    %v539 = vand.u32 2147483647, %v507
    %v540 = vand.u32 2147483647, %v508
    %v541 = vand.u32 2147483647, %v509
    %v542 = vand.u32 2147483647, %v510
    %v543 = vand.u32 2147483647, %v511
    %v544 = vand.u32 2147483647, %v512
    %v545 = vand.u32 2147483647, %v513
    %v546 = vand.u32 2147483647, %v514
    %v547 = vand.u32 2147483647, %v515
    %v548 = vand.u32 2147483647, %v516
    %v549 = vand.u32 2147483647, %v517
    %v550 = vand.u32 2147483647, %v518
    %v551 = vand.u32 2147483647, %v519
    %v552 = vand.u32 2147483647, %v520
    %v553 = vand.u32 2147483647, %v521
    %v554 = vand.u32 2147483647, %v522
    %v555 = vand.u32 2147483647, %v523
    %v556 = vmul.f32 %v524, 0.3275911
    %v557 = vmul.f32 %v525, 0.3275911
    %v558 = vmul.f32 %v526, 0.3275911
    %v559 = vmul.f32 %v527, 0.3275911
    %v560 = vmul.f32 %v528, 0.3275911
    %v561 = vmul.f32 %v529, 0.3275911
    %v562 = vmul.f32 %v530, 0.3275911
    %v563 = vmul.f32 %v531, 0.3275911
    %v564 = vmul.f32 %v532, 0.3275911
    %v565 = vmul.f32 %v533, 0.3275911
    %v566 = vmul.f32 %v534, 0.3275911
    %v567 = vmul.f32 %v535, 0.3275911
    %v568 = vmul.f32 %v536, 0.3275911
    %v569 = vmul.f32 %v537, 0.3275911
    %v570 = vmul.f32 %v538, 0.3275911
    %v571 = vmul.f32 %v539, 0.3275911
    %v572 = vmul.f32 %v540, 0.3275911
    %v573 = vmul.f32 %v541, 0.3275911
    %v574 = vmul.f32 %v542, 0.3275911
    %v575 = vmul.f32 %v543, 0.3275911
    %v576 = vmul.f32 %v544, 0.3275911
    %v577 = vmul.f32 %v545, 0.3275911
    %v578 = vmul.f32 %v546, 0.3275911
    %v579 = vmul.f32 %v547, 0.3275911
    %v580 = vmul.f32 %v548, 0.3275911
    %v581 = vmul.f32 %v549, 0.3275911
    %v582 = vmul.f32 %v550, 0.3275911
    %v583 = vmul.f32 %v551, 0.3275911
    %v584 = vmul.f32 %v552, 0.3275911
    %v585 = vmul.f32 %v553, 0.3275911
    %v586 = vmul.f32 %v554, 0.3275911
    %v587 = vmul.f32 %v555, 0.3275911
    %v588 = vadd.f32 %v556, 1.0
    %v589 = vadd.f32 %v557, 1.0
    %v590 = vadd.f32 %v558, 1.0
    %v591 = vadd.f32 %v559, 1.0
    %v592 = vadd.f32 %v560, 1.0
    %v593 = vadd.f32 %v561, 1.0
    %v594 = vadd.f32 %v562, 1.0
    %v595 = vadd.f32 %v563, 1.0
    %v596 = vadd.f32 %v564, 1.0
    %v597 = vadd.f32 %v565, 1.0
    %v598 = vadd.f32 %v566, 1.0
    %v599 = vadd.f32 %v567, 1.0
    %v600 = vadd.f32 %v568, 1.0
    %v601 = vadd.f32 %v569, 1.0
    %v602 = vadd.f32 %v570, 1.0
    %v603 = vadd.f32 %v571, 1.0
    %v604 = vadd.f32 %v572, 1.0
    %v605 = vadd.f32 %v573, 1.0
    %v606 = vadd.f32 %v574, 1.0
    %v607 = vadd.f32 %v575, 1.0
    %v608 = vadd.f32 %v576, 1.0
    %v609 = vadd.f32 %v577, 1.0
    %v610 = vadd.f32 %v578, 1.0
    %v611 = vadd.f32 %v579, 1.0
    %v612 = vadd.f32 %v580, 1.0
    %v613 = vadd.f32 %v581, 1.0
    %v614 = vadd.f32 %v582, 1.0
    %v615 = vadd.f32 %v583, 1.0
    %v616 = vadd.f32 %v584, 1.0
    %v617 = vadd.f32 %v585, 1.0
    %v618 = vadd.f32 %v586, 1.0
    %v619 = vadd.f32 %v587, 1.0
    %v620 = vrcp.pop %v588
    %v621 = vmul.f32 1.0, %v620
    %v622 = vrcp.pop %v589
    %v623 = vmul.f32 1.0, %v622
    %v624 = vrcp.pop %v590
    %v625 = vmul.f32 1.0, %v624
    %v626 = vrcp.pop %v591
    %v627 = vmul.f32 1.0, %v626
    %v628 = vrcp.pop %v592
    %v629 = vmul.f32 1.0, %v628
    %v630 = vrcp.pop %v593
    %v631 = vmul.f32 1.0, %v630
    %v632 = vrcp.pop %v594
    %v633 = vmul.f32 1.0, %v632
    %v634 = vrcp.pop %v595
    %v635 = vmul.f32 1.0, %v634
    %v636 = vrcp.pop %v596
    %v637 = vmul.f32 1.0, %v636
    %v638 = vrcp.pop %v597
    %v639 = vmul.f32 1.0, %v638
    %v640 = vrcp.pop %v598
    %v641 = vmul.f32 1.0, %v640
    %v642 = vrcp.pop %v599
    %v643 = vmul.f32 1.0, %v642
    %v644 = vrcp.pop %v600
    %v645 = vmul.f32 1.0, %v644
    %v646 = vrcp.pop %v601
    %v647 = vmul.f32 1.0, %v646
    %v648 = vrcp.pop %v602
    %v649 = vmul.f32 1.0, %v648
    %v650 = vrcp.pop %v603
    %v651 = vmul.f32 1.0, %v650
    %v652 = vrcp.pop %v604
    %v653 = vmul.f32 1.0, %v652
    %v654 = vrcp.pop %v605
    %v655 = vmul.f32 1.0, %v654
    %v656 = vrcp.pop %v606
    %v657 = vmul.f32 1.0, %v656
    %v658 = vrcp.pop %v607
    %v659 = vmul.f32 1.0, %v658
    %v660 = vrcp.pop %v608
    %v661 = vmul.f32 1.0, %v660
    %v662 = vrcp.pop %v609
    %v663 = vmul.f32 1.0, %v662
    %v664 = vrcp.pop %v610
    %v665 = vmul.f32 1.0, %v664
    %v666 = vrcp.pop %v611
    %v667 = vmul.f32 1.0, %v666
    %v668 = vrcp.pop %v612
    %v669 = vmul.f32 1.0, %v668
    %v670 = vrcp.pop %v613
    %v671 = vmul.f32 1.0, %v670
    %v672 = vrcp.pop %v614
    %v673 = vmul.f32 1.0, %v672
    %v674 = vrcp.pop %v615
    %v675 = vmul.f32 1.0, %v674
    %v676 = vrcp.pop %v616
    %v677 = vmul.f32 1.0, %v676
    %v678 = vrcp.pop %v617
    %v679 = vmul.f32 1.0, %v678
    %v680 = vrcp.pop %v618
    %v681 = vmul.f32 1.0, %v680
    %v682 = vrcp.pop %v619
    %v683 = vmul.f32 1.0, %v682
    %v684 = vmul.f32 %v621, 1.0614054
    %v685 = vmul.f32 %v623, 1.0614054
    %v686 = vmul.f32 %v625, 1.0614054
    %v687 = vmul.f32 %v627, 1.0614054
    %v688 = vmul.f32 %v629, 1.0614054
    %v689 = vmul.f32 %v631, 1.0614054
    %v690 = vmul.f32 %v633, 1.0614054
    %v691 = vmul.f32 %v635, 1.0614054
    %v692 = vmul.f32 %v637, 1.0614054
    %v693 = vmul.f32 %v639, 1.0614054
    %v694 = vmul.f32 %v641, 1.0614054
    %v695 = vmul.f32 %v643, 1.0614054
    %v696 = vmul.f32 %v645, 1.0614054
    %v697 = vmul.f32 %v647, 1.0614054
    %v698 = vmul.f32 %v649, 1.0614054
    %v699 = vmul.f32 %v651, 1.0614054
    %v700 = vmul.f32 %v653, 1.0614054
    %v701 = vmul.f32 %v655, 1.0614054
    %v702 = vmul.f32 %v657, 1.0614054
    %v703 = vmul.f32 %v659, 1.0614054
    %v704 = vmul.f32 %v661, 1.0614054
    %v705 = vmul.f32 %v663, 1.0614054
    %v706 = vmul.f32 %v665, 1.0614054
    %v707 = vmul.f32 %v667, 1.0614054
    %v708 = vmul.f32 %v669, 1.0614054
    %v709 = vmul.f32 %v671, 1.0614054
    %v710 = vmul.f32 %v673, 1.0614054
    %v711 = vmul.f32 %v675, 1.0614054
    %v712 = vmul.f32 %v677, 1.0614054
    %v713 = vmul.f32 %v679, 1.0614054
    %v714 = vmul.f32 %v681, 1.0614054
    %v715 = vmul.f32 %v683, 1.0614054
    %v716 = vadd.f32 %v684, -1.4531521
    %v717 = vadd.f32 %v685, -1.4531521
    %v718 = vadd.f32 %v686, -1.4531521
    %v719 = vadd.f32 %v687, -1.4531521
    %v720 = vadd.f32 %v688, -1.4531521
    %v721 = vadd.f32 %v689, -1.4531521
    %v722 = vadd.f32 %v690, -1.4531521
    %v723 = vadd.f32 %v691, -1.4531521
    %v724 = vadd.f32 %v692, -1.4531521
    %v725 = vadd.f32 %v693, -1.4531521
    %v726 = vadd.f32 %v694, -1.4531521
    %v727 = vadd.f32 %v695, -1.4531521
    %v728 = vadd.f32 %v696, -1.4531521
    %v729 = vadd.f32 %v697, -1.4531521
    %v730 = vadd.f32 %v698, -1.4531521
    %v731 = vadd.f32 %v699, -1.4531521
    %v732 = vadd.f32 %v700, -1.4531521
    %v733 = vadd.f32 %v701, -1.4531521
    %v734 = vadd.f32 %v702, -1.4531521
    %v735 = vadd.f32 %v703, -1.4531521
    %v736 = vadd.f32 %v704, -1.4531521
    %v737 = vadd.f32 %v705, -1.4531521
    %v738 = vadd.f32 %v706, -1.4531521
    %v739 = vadd.f32 %v707, -1.4531521
    %v740 = vadd.f32 %v708, -1.4531521
    %v741 = vadd.f32 %v709, -1.4531521
    %v742 = vadd.f32 %v710, -1.4531521
    %v743 = vadd.f32 %v711, -1.4531521
    %v744 = vadd.f32 %v712, -1.4531521
    %v745 = vadd.f32 %v713, -1.4531521
    %v746 = vadd.f32 %v714, -1.4531521
    %v747 = vadd.f32 %v715, -1.4531521
    %v748 = vmul.f32 %v716, %v621
    %v749 = vmul.f32 %v717, %v623
    %v750 = vmul.f32 %v718, %v625
    %v751 = vmul.f32 %v719, %v627
    %v752 = vmul.f32 %v720, %v629
    %v753 = vmul.f32 %v721, %v631
    %v754 = vmul.f32 %v722, %v633
    %v755 = vmul.f32 %v723, %v635
    %v756 = vmul.f32 %v724, %v637
    %v757 = vmul.f32 %v725, %v639
    %v758 = vmul.f32 %v726, %v641
    %v759 = vmul.f32 %v727, %v643
    %v760 = vmul.f32 %v728, %v645
    %v761 = vmul.f32 %v729, %v647
    %v762 = vmul.f32 %v730, %v649
    %v763 = vmul.f32 %v731, %v651
    %v764 = vmul.f32 %v732, %v653
    %v765 = vmul.f32 %v733, %v655
    %v766 = vmul.f32 %v734, %v657
    %v767 = vmul.f32 %v735, %v659
    %v768 = vmul.f32 %v736, %v661
    %v769 = vmul.f32 %v737, %v663
    %v770 = vmul.f32 %v738, %v665
    %v771 = vmul.f32 %v739, %v667
    %v772 = vmul.f32 %v740, %v669
    %v773 = vmul.f32 %v741, %v671
    %v774 = vmul.f32 %v742, %v673
    %v775 = vmul.f32 %v743, %v675
    %v776 = vmul.f32 %v744, %v677
    %v777 = vmul.f32 %v745, %v679
    %v778 = vmul.f32 %v746, %v681
    %v779 = vmul.f32 %v747, %v683
    %v780 = vadd.f32 %v748, 1.4214138
    %v781 = vadd.f32 %v749, 1.4214138
    %v782 = vadd.f32 %v750, 1.4214138
    %v783 = vadd.f32 %v751, 1.4214138
    %v784 = vadd.f32 %v752, 1.4214138
    %v785 = vadd.f32 %v753, 1.4214138
    %v786 = vadd.f32 %v754, 1.4214138
    %v787 = vadd.f32 %v755, 1.4214138
    %v788 = vadd.f32 %v756, 1.4214138
    %v789 = vadd.f32 %v757, 1.4214138
    %v790 = vadd.f32 %v758, 1.4214138
    %v791 = vadd.f32 %v759, 1.4214138
    %v792 = vadd.f32 %v760, 1.4214138
    %v793 = vadd.f32 %v761, 1.4214138
    %v794 = vadd.f32 %v762, 1.4214138
    %v795 = vadd.f32 %v763, 1.4214138
    %v796 = vadd.f32 %v764, 1.4214138
    %v797 = vadd.f32 %v765, 1.4214138
    %v798 = vadd.f32 %v766, 1.4214138
    %v799 = vadd.f32 %v767, 1.4214138
    %v800 = vadd.f32 %v768, 1.4214138
    %v801 = vadd.f32 %v769, 1.4214138
    %v802 = vadd.f32 %v770, 1.4214138
    %v803 = vadd.f32 %v771, 1.4214138
    %v804 = vadd.f32 %v772, 1.4214138
    %v805 = vadd.f32 %v773, 1.4214138
    %v806 = vadd.f32 %v774, 1.4214138
    %v807 = vadd.f32 %v775, 1.4214138
    %v808 = vadd.f32 %v776, 1.4214138
    %v809 = vadd.f32 %v777, 1.4214138
    %v810 = vadd.f32 %v778, 1.4214138
    %v811 = vadd.f32 %v779, 1.4214138
    %v812 = vmul.f32 %v780, %v621
    %v813 = vmul.f32 %v781, %v623
    %v814 = vmul.f32 %v782, %v625
    %v815 = vmul.f32 %v783, %v627
    %v816 = vmul.f32 %v784, %v629
    %v817 = vmul.f32 %v785, %v631
    %v818 = vmul.f32 %v786, %v633
    %v819 = vmul.f32 %v787, %v635
    %v820 = vmul.f32 %v788, %v637
    %v821 = vmul.f32 %v789, %v639
    %v822 = vmul.f32 %v790, %v641
    %v823 = vmul.f32 %v791, %v643
    %v824 = vmul.f32 %v792, %v645
    %v825 = vmul.f32 %v793, %v647
    %v826 = vmul.f32 %v794, %v649
    %v827 = vmul.f32 %v795, %v651
    %v828 = vmul.f32 %v796, %v653
    %v829 = vmul.f32 %v797, %v655
    %v830 = vmul.f32 %v798, %v657
    %v831 = vmul.f32 %v799, %v659
    %v832 = vmul.f32 %v800, %v661
    %v833 = vmul.f32 %v801, %v663
    %v834 = vmul.f32 %v802, %v665
    %v835 = vmul.f32 %v803, %v667
    %v836 = vmul.f32 %v804, %v669
    %v837 = vmul.f32 %v805, %v671
    %v838 = vmul.f32 %v806, %v673
    %v839 = vmul.f32 %v807, %v675
    %v840 = vmul.f32 %v808, %v677
    %v841 = vmul.f32 %v809, %v679
    %v842 = vmul.f32 %v810, %v681
    %v843 = vmul.f32 %v811, %v683
    %v844 = vadd.f32 %v812, -0.28449672
    %v845 = vadd.f32 %v813, -0.28449672
    %v846 = vadd.f32 %v814, -0.28449672
    %v847 = vadd.f32 %v815, -0.28449672
    %v848 = vadd.f32 %v816, -0.28449672
    %v849 = vadd.f32 %v817, -0.28449672
    %v850 = vadd.f32 %v818, -0.28449672
    %v851 = vadd.f32 %v819, -0.28449672
    %v852 = vadd.f32 %v820, -0.28449672
    %v853 = vadd.f32 %v821, -0.28449672
    %v854 = vadd.f32 %v822, -0.28449672
    %v855 = vadd.f32 %v823, -0.28449672
    %v856 = vadd.f32 %v824, -0.28449672
    %v857 = vadd.f32 %v825, -0.28449672
    %v858 = vadd.f32 %v826, -0.28449672
    %v859 = vadd.f32 %v827, -0.28449672
    %v860 = vadd.f32 %v828, -0.28449672
    %v861 = vadd.f32 %v829, -0.28449672
    %v862 = vadd.f32 %v830, -0.28449672
    %v863 = vadd.f32 %v831, -0.28449672
    %v864 = vadd.f32 %v832, -0.28449672
    %v865 = vadd.f32 %v833, -0.28449672
    %v866 = vadd.f32 %v834, -0.28449672
    %v867 = vadd.f32 %v835, -0.28449672
    %v868 = vadd.f32 %v836, -0.28449672
    %v869 = vadd.f32 %v837, -0.28449672
    %v870 = vadd.f32 %v838, -0.28449672
    %v871 = vadd.f32 %v839, -0.28449672
    %v872 = vadd.f32 %v840, -0.28449672
    %v873 = vadd.f32 %v841, -0.28449672
    %v874 = vadd.f32 %v842, -0.28449672
    %v875 = vadd.f32 %v843, -0.28449672
    %v876 = vmul.f32 %v844, %v621
    %v877 = vmul.f32 %v845, %v623
    %v878 = vmul.f32 %v846, %v625
    %v879 = vmul.f32 %v847, %v627
    %v880 = vmul.f32 %v848, %v629
    %v881 = vmul.f32 %v849, %v631
    %v882 = vmul.f32 %v850, %v633
    %v883 = vmul.f32 %v851, %v635
    %v884 = vmul.f32 %v852, %v637
    %v885 = vmul.f32 %v853, %v639
    %v886 = vmul.f32 %v854, %v641
    %v887 = vmul.f32 %v855, %v643
    %v888 = vmul.f32 %v856, %v645
    %v889 = vmul.f32 %v857, %v647
    %v890 = vmul.f32 %v858, %v649
    %v891 = vmul.f32 %v859, %v651
    %v892 = vmul.f32 %v860, %v653
    %v893 = vmul.f32 %v861, %v655
    %v894 = vmul.f32 %v862, %v657
    %v895 = vmul.f32 %v863, %v659
    %v896 = vmul.f32 %v864, %v661
    %v897 = vmul.f32 %v865, %v663
    %v898 = vmul.f32 %v866, %v665
    %v899 = vmul.f32 %v867, %v667
    %v900 = vmul.f32 %v868, %v669
    %v901 = vmul.f32 %v869, %v671
    %v902 = vmul.f32 %v870, %v673
    %v903 = vmul.f32 %v871, %v675
    %v904 = vmul.f32 %v872, %v677
    %v905 = vmul.f32 %v873, %v679
    %v906 = vmul.f32 %v874, %v681
    %v907 = vmul.f32 %v875, %v683
    %v908 = vadd.f32 %v876, 0.2548296
    %v909 = vadd.f32 %v877, 0.2548296
    %v910 = vadd.f32 %v878, 0.2548296
    %v911 = vadd.f32 %v879, 0.2548296
    %v912 = vadd.f32 %v880, 0.2548296
    %v913 = vadd.f32 %v881, 0.2548296
    %v914 = vadd.f32 %v882, 0.2548296
    %v915 = vadd.f32 %v883, 0.2548296
    %v916 = vadd.f32 %v884, 0.2548296
    %v917 = vadd.f32 %v885, 0.2548296
    %v918 = vadd.f32 %v886, 0.2548296
    %v919 = vadd.f32 %v887, 0.2548296
    %v920 = vadd.f32 %v888, 0.2548296
    %v921 = vadd.f32 %v889, 0.2548296
    %v922 = vadd.f32 %v890, 0.2548296
    %v923 = vadd.f32 %v891, 0.2548296
    %v924 = vadd.f32 %v892, 0.2548296
    %v925 = vadd.f32 %v893, 0.2548296
    %v926 = vadd.f32 %v894, 0.2548296
    %v927 = vadd.f32 %v895, 0.2548296
    %v928 = vadd.f32 %v896, 0.2548296
    %v929 = vadd.f32 %v897, 0.2548296
    %v930 = vadd.f32 %v898, 0.2548296
    %v931 = vadd.f32 %v899, 0.2548296
    %v932 = vadd.f32 %v900, 0.2548296
    %v933 = vadd.f32 %v901, 0.2548296
    %v934 = vadd.f32 %v902, 0.2548296
    %v935 = vadd.f32 %v903, 0.2548296
    %v936 = vadd.f32 %v904, 0.2548296
    %v937 = vadd.f32 %v905, 0.2548296
    %v938 = vadd.f32 %v906, 0.2548296
    %v939 = vadd.f32 %v907, 0.2548296
    %v940 = vmul.f32 %v908, %v621
    %v941 = vmul.f32 %v909, %v623
    %v942 = vmul.f32 %v910, %v625
    %v943 = vmul.f32 %v911, %v627
    %v944 = vmul.f32 %v912, %v629
    %v945 = vmul.f32 %v913, %v631
    %v946 = vmul.f32 %v914, %v633
    %v947 = vmul.f32 %v915, %v635
    %v948 = vmul.f32 %v916, %v637
    %v949 = vmul.f32 %v917, %v639
    %v950 = vmul.f32 %v918, %v641
    %v951 = vmul.f32 %v919, %v643
    %v952 = vmul.f32 %v920, %v645
    %v953 = vmul.f32 %v921, %v647
    %v954 = vmul.f32 %v922, %v649
    %v955 = vmul.f32 %v923, %v651
    %v956 = vmul.f32 %v924, %v653
    %v957 = vmul.f32 %v925, %v655
    %v958 = vmul.f32 %v926, %v657
    %v959 = vmul.f32 %v927, %v659
    %v960 = vmul.f32 %v928, %v661
    %v961 = vmul.f32 %v929, %v663
    %v962 = vmul.f32 %v930, %v665
    %v963 = vmul.f32 %v931, %v667
    %v964 = vmul.f32 %v932, %v669
    %v965 = vmul.f32 %v933, %v671
    %v966 = vmul.f32 %v934, %v673
    %v967 = vmul.f32 %v935, %v675
    %v968 = vmul.f32 %v936, %v677
    %v969 = vmul.f32 %v937, %v679
    %v970 = vmul.f32 %v938, %v681
    %v971 = vmul.f32 %v939, %v683
    %v972 = vsub.f32 0.0, %v524
    %v973 = vsub.f32 0.0, %v525
    %v974 = vsub.f32 0.0, %v526
    %v975 = vsub.f32 0.0, %v527
    %v976 = vsub.f32 0.0, %v528
    %v977 = vsub.f32 0.0, %v529
    %v978 = vsub.f32 0.0, %v530
    %v979 = vsub.f32 0.0, %v531
    %v980 = vsub.f32 0.0, %v532
    %v981 = vsub.f32 0.0, %v533
    %v982 = vsub.f32 0.0, %v534
    %v983 = vsub.f32 0.0, %v535
    %v984 = vsub.f32 0.0, %v536
    %v985 = vsub.f32 0.0, %v537
    %v986 = vsub.f32 0.0, %v538
    %v987 = vsub.f32 0.0, %v539
    %v988 = vsub.f32 0.0, %v540
    %v989 = vsub.f32 0.0, %v541
    %v990 = vsub.f32 0.0, %v542
    %v991 = vsub.f32 0.0, %v543
    %v992 = vsub.f32 0.0, %v544
    %v993 = vsub.f32 0.0, %v545
    %v994 = vsub.f32 0.0, %v546
    %v995 = vsub.f32 0.0, %v547
    %v996 = vsub.f32 0.0, %v548
    %v997 = vsub.f32 0.0, %v549
    %v998 = vsub.f32 0.0, %v550
    %v999 = vsub.f32 0.0, %v551
    %v1000 = vsub.f32 0.0, %v552
    %v1001 = vsub.f32 0.0, %v553
    %v1002 = vsub.f32 0.0, %v554
    %v1003 = vsub.f32 0.0, %v555
    %v1004 = vmul.f32 %v972, %v524
    %v1005 = vmul.f32 %v973, %v525
    %v1006 = vmul.f32 %v974, %v526
    %v1007 = vmul.f32 %v975, %v527
    %v1008 = vmul.f32 %v976, %v528
    %v1009 = vmul.f32 %v977, %v529
    %v1010 = vmul.f32 %v978, %v530
    %v1011 = vmul.f32 %v979, %v531
    %v1012 = vmul.f32 %v980, %v532
    %v1013 = vmul.f32 %v981, %v533
    %v1014 = vmul.f32 %v982, %v534
    %v1015 = vmul.f32 %v983, %v535
    %v1016 = vmul.f32 %v984, %v536
    %v1017 = vmul.f32 %v985, %v537
    %v1018 = vmul.f32 %v986, %v538
    %v1019 = vmul.f32 %v987, %v539
    %v1020 = vmul.f32 %v988, %v540
    %v1021 = vmul.f32 %v989, %v541
    %v1022 = vmul.f32 %v990, %v542
    %v1023 = vmul.f32 %v991, %v543
    %v1024 = vmul.f32 %v992, %v544
    %v1025 = vmul.f32 %v993, %v545
    %v1026 = vmul.f32 %v994, %v546
    %v1027 = vmul.f32 %v995, %v547
    %v1028 = vmul.f32 %v996, %v548
    %v1029 = vmul.f32 %v997, %v549
    %v1030 = vmul.f32 %v998, %v550
    %v1031 = vmul.f32 %v999, %v551
    %v1032 = vmul.f32 %v1000, %v552
    %v1033 = vmul.f32 %v1001, %v553
    %v1034 = vmul.f32 %v1002, %v554
    %v1035 = vmul.f32 %v1003, %v555
    %v1036 = vmul.f32 %v1004, 1.442695
    %v1037 = vpow.pop %v1036
    %v1038 = vmul.f32 %v1005, 1.442695
    %v1039 = vpow.pop %v1038
    %v1040 = vmul.f32 %v1006, 1.442695
    %v1041 = vpow.pop %v1040
    %v1042 = vmul.f32 %v1007, 1.442695
    %v1043 = vpow.pop %v1042
    %v1044 = vmul.f32 %v1008, 1.442695
    %v1045 = vpow.pop %v1044
    %v1046 = vmul.f32 %v1009, 1.442695
    %v1047 = vpow.pop %v1046
    %v1048 = vmul.f32 %v1010, 1.442695
    %v1049 = vpow.pop %v1048
    %v1050 = vmul.f32 %v1011, 1.442695
    %v1051 = vpow.pop %v1050
    %v1052 = vmul.f32 %v1012, 1.442695
    %v1053 = vpow.pop %v1052
    %v1054 = vmul.f32 %v1013, 1.442695
    %v1055 = vpow.pop %v1054
    %v1056 = vmul.f32 %v1014, 1.442695
    %v1057 = vpow.pop %v1056
    %v1058 = vmul.f32 %v1015, 1.442695
    %v1059 = vpow.pop %v1058
    %v1060 = vmul.f32 %v1016, 1.442695
    %v1061 = vpow.pop %v1060
    %v1062 = vmul.f32 %v1017, 1.442695
    %v1063 = vpow.pop %v1062
    %v1064 = vmul.f32 %v1018, 1.442695
    %v1065 = vpow.pop %v1064
    %v1066 = vmul.f32 %v1019, 1.442695
    %v1067 = vpow.pop %v1066
    %v1068 = vmul.f32 %v1020, 1.442695
    %v1069 = vpow.pop %v1068
    %v1070 = vmul.f32 %v1021, 1.442695
    %v1071 = vpow.pop %v1070
    %v1072 = vmul.f32 %v1022, 1.442695
    %v1073 = vpow.pop %v1072
    %v1074 = vmul.f32 %v1023, 1.442695
    %v1075 = vpow.pop %v1074
    %v1076 = vmul.f32 %v1024, 1.442695
    %v1077 = vpow.pop %v1076
    %v1078 = vmul.f32 %v1025, 1.442695
    %v1079 = vpow.pop %v1078
    %v1080 = vmul.f32 %v1026, 1.442695
    %v1081 = vpow.pop %v1080
    %v1082 = vmul.f32 %v1027, 1.442695
    %v1083 = vpow.pop %v1082
    %v1084 = vmul.f32 %v1028, 1.442695
    %v1085 = vpow.pop %v1084
    %v1086 = vmul.f32 %v1029, 1.442695
    %v1087 = vpow.pop %v1086
    %v1088 = vmul.f32 %v1030, 1.442695
    %v1089 = vpow.pop %v1088
    %v1090 = vmul.f32 %v1031, 1.442695
    %v1091 = vpow.pop %v1090
    %v1092 = vmul.f32 %v1032, 1.442695
    %v1093 = vpow.pop %v1092
    %v1094 = vmul.f32 %v1033, 1.442695
    %v1095 = vpow.pop %v1094
    %v1096 = vmul.f32 %v1034, 1.442695
    %v1097 = vpow.pop %v1096
    %v1098 = vmul.f32 %v1035, 1.442695
    %v1099 = vpow.pop %v1098
    %v1100 = vmul.f32 %v940, %v1037
    %v1101 = vmul.f32 %v941, %v1039
    %v1102 = vmul.f32 %v942, %v1041
    %v1103 = vmul.f32 %v943, %v1043
    %v1104 = vmul.f32 %v944, %v1045
    %v1105 = vmul.f32 %v945, %v1047
    %v1106 = vmul.f32 %v946, %v1049
    %v1107 = vmul.f32 %v947, %v1051
    %v1108 = vmul.f32 %v948, %v1053
    %v1109 = vmul.f32 %v949, %v1055
    %v1110 = vmul.f32 %v950, %v1057
    %v1111 = vmul.f32 %v951, %v1059
    %v1112 = vmul.f32 %v952, %v1061
    %v1113 = vmul.f32 %v953, %v1063
    %v1114 = vmul.f32 %v954, %v1065
    %v1115 = vmul.f32 %v955, %v1067
    %v1116 = vmul.f32 %v956, %v1069
    %v1117 = vmul.f32 %v957, %v1071
    %v1118 = vmul.f32 %v958, %v1073
    %v1119 = vmul.f32 %v959, %v1075
    %v1120 = vmul.f32 %v960, %v1077
    %v1121 = vmul.f32 %v961, %v1079
    %v1122 = vmul.f32 %v962, %v1081
    %v1123 = vmul.f32 %v963, %v1083
    %v1124 = vmul.f32 %v964, %v1085
    %v1125 = vmul.f32 %v965, %v1087
    %v1126 = vmul.f32 %v966, %v1089
    %v1127 = vmul.f32 %v967, %v1091
    %v1128 = vmul.f32 %v968, %v1093
    %v1129 = vmul.f32 %v969, %v1095
    %v1130 = vmul.f32 %v970, %v1097
    %v1131 = vmul.f32 %v971, %v1099
    %v1132 = vsub.f32 1.0, %v1100
    %v1133 = vsub.f32 1.0, %v1101
    %v1134 = vsub.f32 1.0, %v1102
    %v1135 = vsub.f32 1.0, %v1103
    %v1136 = vsub.f32 1.0, %v1104
    %v1137 = vsub.f32 1.0, %v1105
    %v1138 = vsub.f32 1.0, %v1106
    %v1139 = vsub.f32 1.0, %v1107
    %v1140 = vsub.f32 1.0, %v1108
    %v1141 = vsub.f32 1.0, %v1109
    %v1142 = vsub.f32 1.0, %v1110
    %v1143 = vsub.f32 1.0, %v1111
    %v1144 = vsub.f32 1.0, %v1112
    %v1145 = vsub.f32 1.0, %v1113
    %v1146 = vsub.f32 1.0, %v1114
    %v1147 = vsub.f32 1.0, %v1115
    %v1148 = vsub.f32 1.0, %v1116
    %v1149 = vsub.f32 1.0, %v1117
    %v1150 = vsub.f32 1.0, %v1118
    %v1151 = vsub.f32 1.0, %v1119
    %v1152 = vsub.f32 1.0, %v1120
    %v1153 = vsub.f32 1.0, %v1121
    %v1154 = vsub.f32 1.0, %v1122
    %v1155 = vsub.f32 1.0, %v1123
    %v1156 = vsub.f32 1.0, %v1124
    %v1157 = vsub.f32 1.0, %v1125
    %v1158 = vsub.f32 1.0, %v1126
    %v1159 = vsub.f32 1.0, %v1127
    %v1160 = vsub.f32 1.0, %v1128
    %v1161 = vsub.f32 1.0, %v1129
    %v1162 = vsub.f32 1.0, %v1130
    %v1163 = vsub.f32 1.0, %v1131
    %vm1164 = vcmp.ge.f32.partialorder %v492, 0.0
    %vm1165 = vcmp.ge.f32.partialorder %v493, 0.0
    %vm1166 = vcmp.ge.f32.partialorder %v494, 0.0
    %vm1167 = vcmp.ge.f32.partialorder %v495, 0.0
    %vm1168 = vcmp.ge.f32.partialorder %v496, 0.0
    %vm1169 = vcmp.ge.f32.partialorder %v497, 0.0
    %vm1170 = vcmp.ge.f32.partialorder %v498, 0.0
    %vm1171 = vcmp.ge.f32.partialorder %v499, 0.0
    %vm1172 = vcmp.ge.f32.partialorder %v500, 0.0
    %vm1173 = vcmp.ge.f32.partialorder %v501, 0.0
    %vm1174 = vcmp.ge.f32.partialorder %v502, 0.0
    %vm1175 = vcmp.ge.f32.partialorder %v503, 0.0
    %vm1176 = vcmp.ge.f32.partialorder %v504, 0.0
    %vm1177 = vcmp.ge.f32.partialorder %v505, 0.0
    %vm1178 = vcmp.ge.f32.partialorder %v506, 0.0
    %vm1179 = vcmp.ge.f32.partialorder %v507, 0.0
    %vm1180 = vcmp.ge.f32.partialorder %v508, 0.0
    %vm1181 = vcmp.ge.f32.partialorder %v509, 0.0
    %vm1182 = vcmp.ge.f32.partialorder %v510, 0.0
    %vm1183 = vcmp.ge.f32.partialorder %v511, 0.0
    %vm1184 = vcmp.ge.f32.partialorder %v512, 0.0
    %vm1185 = vcmp.ge.f32.partialorder %v513, 0.0
    %vm1186 = vcmp.ge.f32.partialorder %v514, 0.0
    %vm1187 = vcmp.ge.f32.partialorder %v515, 0.0
    %vm1188 = vcmp.ge.f32.partialorder %v516, 0.0
    %vm1189 = vcmp.ge.f32.partialorder %v517, 0.0
    %vm1190 = vcmp.ge.f32.partialorder %v518, 0.0
    %vm1191 = vcmp.ge.f32.partialorder %v519, 0.0
    %vm1192 = vcmp.ge.f32.partialorder %v520, 0.0
    %vm1193 = vcmp.ge.f32.partialorder %v521, 0.0
    %vm1194 = vcmp.ge.f32.partialorder %v522, 0.0
    %vm1195 = vcmp.ge.f32.partialorder %v523, 0.0
    %v1196 = vsub.f32 0.0, %v1132
    %v1197 = vsub.f32 0.0, %v1133
    %v1198 = vsub.f32 0.0, %v1134
    %v1199 = vsub.f32 0.0, %v1135
    %v1200 = vsub.f32 0.0, %v1136
    %v1201 = vsub.f32 0.0, %v1137
    %v1202 = vsub.f32 0.0, %v1138
    %v1203 = vsub.f32 0.0, %v1139
    %v1204 = vsub.f32 0.0, %v1140
    %v1205 = vsub.f32 0.0, %v1141
    %v1206 = vsub.f32 0.0, %v1142
    %v1207 = vsub.f32 0.0, %v1143
    %v1208 = vsub.f32 0.0, %v1144
    %v1209 = vsub.f32 0.0, %v1145
    %v1210 = vsub.f32 0.0, %v1146
    %v1211 = vsub.f32 0.0, %v1147
    %v1212 = vsub.f32 0.0, %v1148
    %v1213 = vsub.f32 0.0, %v1149
    %v1214 = vsub.f32 0.0, %v1150
    %v1215 = vsub.f32 0.0, %v1151
    %v1216 = vsub.f32 0.0, %v1152
    %v1217 = vsub.f32 0.0, %v1153
    %v1218 = vsub.f32 0.0, %v1154
    %v1219 = vsub.f32 0.0, %v1155
    %v1220 = vsub.f32 0.0, %v1156
    %v1221 = vsub.f32 0.0, %v1157
    %v1222 = vsub.f32 0.0, %v1158
    %v1223 = vsub.f32 0.0, %v1159
    %v1224 = vsub.f32 0.0, %v1160
    %v1225 = vsub.f32 0.0, %v1161
    %v1226 = vsub.f32 0.0, %v1162
    %v1227 = vsub.f32 0.0, %v1163
    %v1228 = vsel %vm1164, %v1132, %v1196
    %v1229 = vsel %vm1165, %v1133, %v1197
    %v1230 = vsel %vm1166, %v1134, %v1198
    %v1231 = vsel %vm1167, %v1135, %v1199
    %v1232 = vsel %vm1168, %v1136, %v1200
    %v1233 = vsel %vm1169, %v1137, %v1201
    %v1234 = vsel %vm1170, %v1138, %v1202
    %v1235 = vsel %vm1171, %v1139, %v1203
    %v1236 = vsel %vm1172, %v1140, %v1204
    %v1237 = vsel %vm1173, %v1141, %v1205
    %v1238 = vsel %vm1174, %v1142, %v1206
    %v1239 = vsel %vm1175, %v1143, %v1207
    %v1240 = vsel %vm1176, %v1144, %v1208
    %v1241 = vsel %vm1177, %v1145, %v1209
    %v1242 = vsel %vm1178, %v1146, %v1210
    %v1243 = vsel %vm1179, %v1147, %v1211
    %v1244 = vsel %vm1180, %v1148, %v1212
    %v1245 = vsel %vm1181, %v1149, %v1213
    %v1246 = vsel %vm1182, %v1150, %v1214
    %v1247 = vsel %vm1183, %v1151, %v1215
    %v1248 = vsel %vm1184, %v1152, %v1216
    %v1249 = vsel %vm1185, %v1153, %v1217
    %v1250 = vsel %vm1186, %v1154, %v1218
    %v1251 = vsel %vm1187, %v1155, %v1219
    %v1252 = vsel %vm1188, %v1156, %v1220
    %v1253 = vsel %vm1189, %v1157, %v1221
    %v1254 = vsel %vm1190, %v1158, %v1222
    %v1255 = vsel %vm1191, %v1159, %v1223
    %v1256 = vsel %vm1192, %v1160, %v1224
    %v1257 = vsel %vm1193, %v1161, %v1225
    %v1258 = vsel %vm1194, %v1162, %v1226
    %v1259 = vsel %vm1195, %v1163, %v1227
    %v1260 = vadd.f32 %v1228, 1.0
    %v1261 = vadd.f32 %v1229, 1.0
    %v1262 = vadd.f32 %v1230, 1.0
    %v1263 = vadd.f32 %v1231, 1.0
    %v1264 = vadd.f32 %v1232, 1.0
    %v1265 = vadd.f32 %v1233, 1.0
    %v1266 = vadd.f32 %v1234, 1.0
    %v1267 = vadd.f32 %v1235, 1.0
    %v1268 = vadd.f32 %v1236, 1.0
    %v1269 = vadd.f32 %v1237, 1.0
    %v1270 = vadd.f32 %v1238, 1.0
    %v1271 = vadd.f32 %v1239, 1.0
    %v1272 = vadd.f32 %v1240, 1.0
    %v1273 = vadd.f32 %v1241, 1.0
    %v1274 = vadd.f32 %v1242, 1.0
    %v1275 = vadd.f32 %v1243, 1.0
    %v1276 = vadd.f32 %v1244, 1.0
    %v1277 = vadd.f32 %v1245, 1.0
    %v1278 = vadd.f32 %v1246, 1.0
    %v1279 = vadd.f32 %v1247, 1.0
    %v1280 = vadd.f32 %v1248, 1.0
    %v1281 = vadd.f32 %v1249, 1.0
    %v1282 = vadd.f32 %v1250, 1.0
    %v1283 = vadd.f32 %v1251, 1.0
    %v1284 = vadd.f32 %v1252, 1.0
    %v1285 = vadd.f32 %v1253, 1.0
    %v1286 = vadd.f32 %v1254, 1.0
    %v1287 = vadd.f32 %v1255, 1.0
    %v1288 = vadd.f32 %v1256, 1.0
    %v1289 = vadd.f32 %v1257, 1.0
    %v1290 = vadd.f32 %v1258, 1.0
    %v1291 = vadd.f32 %v1259, 1.0
    %v1292 = vmul.f32 %v460, %v1260
    %v1293 = vmul.f32 %v461, %v1261
    %v1294 = vmul.f32 %v462, %v1262
    %v1295 = vmul.f32 %v463, %v1263
    %v1296 = vmul.f32 %v464, %v1264
    %v1297 = vmul.f32 %v465, %v1265
    %v1298 = vmul.f32 %v466, %v1266
    %v1299 = vmul.f32 %v467, %v1267
    %v1300 = vmul.f32 %v468, %v1268
    %v1301 = vmul.f32 %v469, %v1269
    %v1302 = vmul.f32 %v470, %v1270
    %v1303 = vmul.f32 %v471, %v1271
    %v1304 = vmul.f32 %v472, %v1272
    %v1305 = vmul.f32 %v473, %v1273
    %v1306 = vmul.f32 %v474, %v1274
    %v1307 = vmul.f32 %v475, %v1275
    %v1308 = vmul.f32 %v476, %v1276
    %v1309 = vmul.f32 %v477, %v1277
    %v1310 = vmul.f32 %v478, %v1278
    %v1311 = vmul.f32 %v479, %v1279
    %v1312 = vmul.f32 %v480, %v1280
    %v1313 = vmul.f32 %v481, %v1281
    %v1314 = vmul.f32 %v482, %v1282
    %v1315 = vmul.f32 %v483, %v1283
    %v1316 = vmul.f32 %v484, %v1284
    %v1317 = vmul.f32 %v485, %v1285
    %v1318 = vmul.f32 %v486, %v1286
    %v1319 = vmul.f32 %v487, %v1287
    %v1320 = vmul.f32 %v488, %v1288
    %v1321 = vmul.f32 %v489, %v1289
    %v1322 = vmul.f32 %v490, %v1290
    %v1323 = vmul.f32 %v491, %v1291
    %v1324 = vld [vmem:[#allocation7] sm:$0xff]
    %v1325 = vld [vmem:[#allocation7 + $0x8] sm:$0xff]
    %v1326 = vld [vmem:[#allocation7 + $0x10] sm:$0xff]
    %v1327 = vld [vmem:[#allocation7 + $0x18] sm:$0xff]
    %v1328 = vld [vmem:[#allocation7 + $0x20] sm:$0xff]
    %v1329 = vld [vmem:[#allocation7 + $0x28] sm:$0xff]
    %v1330 = vld [vmem:[#allocation7 + $0x30] sm:$0xff]
    %v1331 = vld [vmem:[#allocation7 + $0x38] sm:$0xff]
    %v1332 = vld [vmem:[#allocation7 + $0x40] sm:$0xff]
    %v1333 = vld [vmem:[#allocation7 + $0x48] sm:$0xff]
    %v1334 = vld [vmem:[#allocation7 + $0x50] sm:$0xff]
    %v1335 = vld [vmem:[#allocation7 + $0x58] sm:$0xff]
    %v1336 = vld [vmem:[#allocation7 + $0x60] sm:$0xff]
    %v1337 = vld [vmem:[#allocation7 + $0x68] sm:$0xff]
    %v1338 = vld [vmem:[#allocation7 + $0x70] sm:$0xff]
    %v1339 = vld [vmem:[#allocation7 + $0x78] sm:$0xff]
    %v1340 = vld [vmem:[#allocation7 + $0x80] sm:$0xff]
    %v1341 = vld [vmem:[#allocation7 + $0x88] sm:$0xff]
    %v1342 = vld [vmem:[#allocation7 + $0x90] sm:$0xff]
    %v1343 = vld [vmem:[#allocation7 + $0x98] sm:$0xff]
    %v1344 = vld [vmem:[#allocation7 + $0xa0] sm:$0xff]
    %v1345 = vld [vmem:[#allocation7 + $0xa8] sm:$0xff]
    %v1346 = vld [vmem:[#allocation7 + $0xb0] sm:$0xff]
    %v1347 = vld [vmem:[#allocation7 + $0xb8] sm:$0xff]
    %v1348 = vld [vmem:[#allocation7 + $0xc0] sm:$0xff]
    %v1349 = vld [vmem:[#allocation7 + $0xc8] sm:$0xff]
    %v1350 = vld [vmem:[#allocation7 + $0xd0] sm:$0xff]
    %v1351 = vld [vmem:[#allocation7 + $0xd8] sm:$0xff]
    %v1352 = vld [vmem:[#allocation7 + $0xe0] sm:$0xff]
    %v1353 = vld [vmem:[#allocation7 + $0xe8] sm:$0xff]
    %v1354 = vld [vmem:[#allocation7 + $0xf0] sm:$0xff]
    %v1355 = vld [vmem:[#allocation7 + $0xf8] sm:$0xff]
    %v1356 = vld [vmem:[%s4] sm:$0x1]
    %v1358 = vlaneseq
    %v1359 = vshrl.u32 %v1358, 7
    %v1360 = vsub.s32 0, %v1359
    %v1361 = vrot.slane %v1356, %v1360
    %1363 = vmatprep.subr.mxu0 0.0
    %1364 = vmatpush1.msra.mxu0 %v1339
    %1365 = vmatprep.subr.mxu0 0.0
    %1366 = vmatpush1.msra.mxu0 %v1338
    %1367 = vmatprep.subr.mxu0 0.0
    %1368 = vmatpush1.msra.mxu0 %v1337
    %1369 = vmatprep.subr.mxu0 0.0
    %1370 = vmatpush1.msra.mxu0 %v1336
    %1371 = vmatprep.subr.mxu0 0.0
    %1372 = vmatpush1.msra.mxu0 %v1335
    %1373 = vmatprep.subr.mxu0 0.0
    %1374 = vmatpush1.msra.mxu0 %v1334
    %1375 = vmatprep.subr.mxu0 0.0
    %1376 = vmatpush1.msra.mxu0 %v1333
    %1377 = vmatprep.subr.mxu0 0.0
    %1378 = vmatpush1.msra.mxu0 %v1332
    %1379 = vmatprep.subr.mxu0 0.0
    %1380 = vmatpush1.msra.mxu0 %v1331
    %1381 = vmatprep.subr.mxu0 0.0
    %1382 = vmatpush1.msra.mxu0 %v1330
    %1383 = vmatprep.subr.mxu0 0.0
    %1384 = vmatpush1.msra.mxu0 %v1329
    %1385 = vmatprep.subr.mxu0 0.0
    %1386 = vmatpush1.msra.mxu0 %v1328
    %1387 = vmatprep.subr.mxu0 0.0
    %1388 = vmatpush1.msra.mxu0 %v1327
    %1389 = vmatprep.subr.mxu0 0.0
    %1390 = vmatpush1.msra.mxu0 %v1326
    %1391 = vmatprep.subr.mxu0 0.0
    %1392 = vmatpush1.msra.mxu0 %v1325
    %1393 = vmatprep.subr.mxu0 0.0
    %1394 = vmatpush1.msra.mxu0 %v1324
    %1395 = vmatprep.subr.mxu0 0.0
    %1396 = vmatpush2.msra.mxu0 %v1355
    %1397 = vmatprep.subr.mxu0 0.0
    %1398 = vmatpush2.msra.mxu0 %v1354
    %1399 = vmatprep.subr.mxu0 0.0
    %1400 = vmatpush2.msra.mxu0 %v1353
    %1401 = vmatprep.subr.mxu0 0.0
    %1402 = vmatpush2.msra.mxu0 %v1352
    %1403 = vmatprep.subr.mxu0 0.0
    %1404 = vmatpush2.msra.mxu0 %v1351
    %1405 = vmatprep.subr.mxu0 0.0
    %1406 = vmatpush2.msra.mxu0 %v1350
    %1407 = vmatprep.subr.mxu0 0.0
    %1408 = vmatpush2.msra.mxu0 %v1349
    %1409 = vmatprep.subr.mxu0 0.0
    %1410 = vmatpush2.msra.mxu0 %v1348
    %1411 = vmatprep.subr.mxu0 0.0
    %1412 = vmatpush2.msra.mxu0 %v1347
    %1413 = vmatprep.subr.mxu0 0.0
    %1414 = vmatpush2.msra.mxu0 %v1346
    %1415 = vmatprep.subr.mxu0 0.0
    %1416 = vmatpush2.msra.mxu0 %v1345
    %1417 = vmatprep.subr.mxu0 0.0
    %1418 = vmatpush2.msra.mxu0 %v1344
    %1419 = vmatprep.subr.mxu0 0.0
    %1420 = vmatpush2.msra.mxu0 %v1343
    %1421 = vmatprep.subr.mxu0 0.0
    %1422 = vmatpush2.msra.mxu0 %v1342
    %1423 = vmatprep.subr.mxu0 0.0
    %1424 = vmatpush2.msra.mxu0 %v1341
    %1425 = vmatprep.subr.mxu0 0.0
    %1426 = vmatpush2.msra.mxu0 %v1340
    %1427 = vmatprep.mubr.f32.mxu0 %v1293
    %1428 = vmatmul.mubr.f32.gmra.mxu0 %v1292
    %v1429 = vpop.f32.mrf.mxu0
    %v1430 = vadd.f32 %v1361, %v1429
    %v1431 = vpop.f32.mrf.mxu0
    %1432 = vmatprep.mubr.f32.mxu0 %v1295
    %1433 = vmatmul.mubr.f32.gmra.mxu0 %v1294
    %v1434 = vpop.f32.mrf.mxu0
    %v1435 = vadd.f32 %v1361, %v1434
    %v1436 = vpop.f32.mrf.mxu0
    %1437 = vmatprep.mubr.f32.mxu0 %v1297
    %1438 = vmatmul.mubr.f32.gmra.mxu0 %v1296
    %v1439 = vpop.f32.mrf.mxu0
    %v1440 = vadd.f32 %v1361, %v1439
    %v1441 = vpop.f32.mrf.mxu0
    %1442 = vmatprep.mubr.f32.mxu0 %v1299
    %1443 = vmatmul.mubr.f32.gmra.mxu0 %v1298
    %v1444 = vpop.f32.mrf.mxu0
    %v1445 = vadd.f32 %v1361, %v1444
    %v1446 = vpop.f32.mrf.mxu0
    %1447 = vmatprep.mubr.f32.mxu0 %v1301
    %1448 = vmatmul.mubr.f32.gmra.mxu0 %v1300
    %v1449 = vpop.f32.mrf.mxu0
    %v1450 = vadd.f32 %v1361, %v1449
    %v1451 = vpop.f32.mrf.mxu0
    %1452 = vmatprep.mubr.f32.mxu0 %v1303
    %1453 = vmatmul.mubr.f32.gmra.mxu0 %v1302
    %v1454 = vpop.f32.mrf.mxu0
    %v1455 = vadd.f32 %v1361, %v1454
    %v1456 = vpop.f32.mrf.mxu0
    %1457 = vmatprep.mubr.f32.mxu0 %v1305
    %1458 = vmatmul.mubr.f32.gmra.mxu0 %v1304
    %v1459 = vpop.f32.mrf.mxu0
    %v1460 = vadd.f32 %v1361, %v1459
    %v1461 = vpop.f32.mrf.mxu0
    %1462 = vmatprep.mubr.f32.mxu0 %v1307
    %1463 = vmatmul.mubr.f32.gmra.mxu0 %v1306
    %v1464 = vpop.f32.mrf.mxu0
    %v1465 = vadd.f32 %v1361, %v1464
    %v1466 = vpop.f32.mrf.mxu0
    %1467 = vmatprep.mubr.f32.mxu0 %v1309
    %1468 = vmatmul.mubr.f32.gmra.mxu0 %v1308
    %v1469 = vpop.f32.mrf.mxu0
    %v1470 = vadd.f32 %v1361, %v1469
    %v1471 = vpop.f32.mrf.mxu0
    %1472 = vmatprep.mubr.f32.mxu0 %v1311
    %1473 = vmatmul.mubr.f32.gmra.mxu0 %v1310
    %v1474 = vpop.f32.mrf.mxu0
    %v1475 = vadd.f32 %v1361, %v1474
    %v1476 = vpop.f32.mrf.mxu0
    %1477 = vmatprep.mubr.f32.mxu0 %v1313
    %1478 = vmatmul.mubr.f32.gmra.mxu0 %v1312
    %v1479 = vpop.f32.mrf.mxu0
    %v1480 = vadd.f32 %v1361, %v1479
    %v1481 = vpop.f32.mrf.mxu0
    %1482 = vmatprep.mubr.f32.mxu0 %v1315
    %1483 = vmatmul.mubr.f32.gmra.mxu0 %v1314
    %v1484 = vpop.f32.mrf.mxu0
    %v1485 = vadd.f32 %v1361, %v1484
    %v1486 = vpop.f32.mrf.mxu0
    %1487 = vmatprep.mubr.f32.mxu0 %v1317
    %1488 = vmatmul.mubr.f32.gmra.mxu0 %v1316
    %v1489 = vpop.f32.mrf.mxu0
    %v1490 = vadd.f32 %v1361, %v1489
    %v1491 = vpop.f32.mrf.mxu0
    %1492 = vmatprep.mubr.f32.mxu0 %v1319
    %1493 = vmatmul.mubr.f32.gmra.mxu0 %v1318
    %v1494 = vpop.f32.mrf.mxu0
    %v1495 = vadd.f32 %v1361, %v1494
    %v1496 = vpop.f32.mrf.mxu0
    %1497 = vmatprep.mubr.f32.mxu0 %v1321
    %1498 = vmatmul.mubr.f32.gmra.mxu0 %v1320
    %v1499 = vpop.f32.mrf.mxu0
    %v1500 = vadd.f32 %v1361, %v1499
    %v1501 = vpop.f32.mrf.mxu0
    %1502 = vmatprep.mubr.f32.mxu0 %v1323
    %1503 = vmatmul.mubr.f32.gmra.mxu0 %v1322
    %v1504 = vpop.f32.mrf.mxu0
    %v1505 = vadd.f32 %v1361, %v1504
    %v1506 = vpop.f32.mrf.mxu0
    %1507 = vdwg.mxu0
    %1508 = vst [vmem:[#allocation8] sm:$0xff] %v1430
    %1509 = vst [vmem:[#allocation8 + $0x8] sm:$0xff] %v1435
    %1510 = vst [vmem:[#allocation8 + $0x10] sm:$0xff] %v1440
    %1511 = vst [vmem:[#allocation8 + $0x18] sm:$0xff] %v1445
    %1512 = vst [vmem:[#allocation8 + $0x20] sm:$0xff] %v1450
    %1513 = vst [vmem:[#allocation8 + $0x28] sm:$0xff] %v1455
    %1514 = vst [vmem:[#allocation8 + $0x30] sm:$0xff] %v1460
    %1515 = vst [vmem:[#allocation8 + $0x38] sm:$0xff] %v1465
    %1516 = vst [vmem:[#allocation8 + $0x40] sm:$0xff] %v1470
    %1517 = vst [vmem:[#allocation8 + $0x48] sm:$0xff] %v1475
    %1518 = vst [vmem:[#allocation8 + $0x50] sm:$0xff] %v1480
    %1519 = vst [vmem:[#allocation8 + $0x58] sm:$0xff] %v1485
    %1520 = vst [vmem:[#allocation8 + $0x60] sm:$0xff] %v1490
    %1521 = vst [vmem:[#allocation8 + $0x68] sm:$0xff] %v1495
    %1522 = vst [vmem:[#allocation8 + $0x70] sm:$0xff] %v1500
    %1523 = vst [vmem:[#allocation8 + $0x78] sm:$0xff] %v1505
    // Predicated region
    $region34: #{tpu_custom_call.1} parent=1 // pred_check
      _
    $region35: #{tpu_custom_call.1} parent=1 // pred_check_branch
      %1525 = sbr.rel (0) target = $region37
    $region36: #{tpu_custom_call.1} parent=1 // pred_region
      %s1527 = ssub.s32 2048, 2048
      %1528 = vsyncadd [#allocation4], %s1527
      %s1529 = sshll.u32 [#allocation8], 4
      %s1530 = int_to_ptr.vmem [resolvable:$true] %s1529
      %1535 = dma.vmem_to_hbm [thread:$0]  %s1530, 2048, %s5, [#allocation4], 128, 128, 8
    $region37: #{tpu_custom_call.1} parent=1 // pred_fallthru
      _
    // Predicated region
    $region38: #{tpu_custom_call.1} parent=1 // pred_check
      _
    $region39: #{tpu_custom_call.1} parent=1 // pred_check_branch
      %1537 = sbr.rel (0) target = $region41
    $region40: #{tpu_custom_call.1} parent=1 // pred_region
      %1538 = dma.done [#allocation4], 2048
    $region41: #{tpu_custom_call.1} parent=1 // pred_fallthru
      _
    %1539 = vsyncpa [#allocation3], 1
    %1540 = vsyncpa [#allocation6], 1
    %1541 = vsyncpa [#allocation4], 1

</llo_original>
